<compile_context>
chip_gen: v5e
topology: v5e:2x2
jax: 0.10.0
libtpu: 0.0.40
codegen_flags: <defaults>
</compile_context>

<pallas_src>
import numpy as np

import jax
import jax.numpy as jnp
from jax import lax
from jax.experimental import pallas as pl
from jax.experimental.pallas import tpu as pltpu

KW = 4            # conv kernel size (all layers)
PADW = 1          # conv padding (all layers)
LEAKY_SLOPE = 0.2
BN_EPS = 1e-5
LANE = 128

# float32 keeps the kernel within tolerance of the f32 lax.conv reference; set to
# jnp.bfloat16 on v6e/v7x for ~2x MXU throughput + half the constant DMA.
MATMUL_DTYPE = jnp.float32


def _round_up(x, m):
    return (x + m - 1) // m * m


# -------------------------- parameter construction ------------------------

def init_params(key, input_nc, ndf, n_layers):
    params = []
    keys = jax.random.split(key, 16)
    ki = 0

    def nrm(k, shape, std=0.02):
        return (std * jax.random.normal(k, shape)).astype(jnp.float32)

    # layer 1: conv (bias) + leaky
    params.append(dict(kind="bias_leaky",
                       w=nrm(keys[ki], (ndf, input_nc, KW, KW)),
                       b=nrm(keys[ki + 1], (ndf,)),
                       stride=2))
    ki += 2

    nf_mult = 1
    for n in range(1, n_layers):
        nf_prev, nf_mult = nf_mult, min(2 ** n, 8)
        params.append(dict(kind="bn_leaky",
                           w=nrm(keys[ki], (ndf * nf_mult, ndf * nf_prev, KW, KW)),
                           gamma=jnp.ones((ndf * nf_mult,), jnp.float32),
                           beta=jnp.zeros((ndf * nf_mult,), jnp.float32),
                           stride=2))
        ki += 1

    nf_prev, nf_mult = nf_mult, min(2 ** n_layers, 8)
    params.append(dict(kind="bn_leaky",
                       w=nrm(keys[ki], (ndf * nf_mult, ndf * nf_prev, KW, KW)),
                       gamma=jnp.ones((ndf * nf_mult,), jnp.float32),
                       beta=jnp.zeros((ndf * nf_mult,), jnp.float32),
                       stride=1))
    ki += 1

    # final: conv (bias), no activation
    params.append(dict(kind="bias_none",
                       w=nrm(keys[ki], (1, ndf * nf_mult, KW, KW)),
                       b=nrm(keys[ki + 1], (1,)),
                       stride=1))
    return params


# ----------------------- one-time operand packing --------------------------

def _stacked_weights(w_pt, w_in, ow, stride, lw_in_pad, lw_out_pad):
    """Single (KW*lw_in_pad, lw_out_pad) band matrix: horizontal taps + stride + pad.

    Row index  = kh*lw_in_pad + (w_in*Cin + ci)   (UNPADDED input lane layout).
    Col index  = ow*Cout + co                     (padding cols beyond OW*Cout are 0).
    Entry      = W_pt[co, ci, kh, kw]  where  kw = w_in - stride*ow + PADW  (0 outside).
    """
    cout, cin = int(w_pt.shape[0]), int(w_pt.shape[1])
    w_idx = np.arange(w_in)
    ow_idx = np.arange(ow)
    kw_idx = np.arange(KW)
    band = (w_idx[None, :, None] ==
            stride * ow_idx[None, None, :] + kw_idx[:, None, None] - PADW)
    band = jnp.asarray(band.astype(np.float32))              # (KW, w_in, ow)
    wt = jnp.transpose(w_pt, (2, 3, 1, 0))                   # (kh, kw, cin, cout)
    wexp = jnp.einsum('kwo,hkic->hwioc', band, wt)           # (kh, w_in, cin, ow, cout)
    wexp = wexp.reshape(KW, w_in * cin, ow * cout)
    full = jnp.zeros((KW, lw_in_pad, lw_out_pad), jnp.float32)
    full = full.at[:, :w_in * cin, :ow * cout].set(wexp)
    return full.reshape(KW * lw_in_pad, lw_out_pad).astype(MATMUL_DTYPE)


def _tap_plans(h_in, oh, stride):
    """Static per-vertical-tap read plan against the UNPADDED input rows.

    Returns (kind, start_offset, row_count) per kh.  'top'/'bottom' taps read OH-1
    rows and get a single zero row concatenated at the boundary (the padding row).
    """
    plans = []
    for kh in range(KW):
        off = kh - PADW
        if off < 0:                                   # tap reads the top padding row
            plans.append(("top", stride + off, oh - 1))
        elif stride * (oh - 1) + off >= h_in:         # tap reads the bottom padding row
            plans.append(("bottom", off, oh - 1))
        else:
            plans.append(("full", off, oh))
    return tuple(plans)


def _channel_pool(ow, c, lw_pad):
    """pool: (lw_pad, c) sums the (w, c) lanes over w (padding lanes ignored);
    pool_t: (c, lw_pad) broadcasts per-channel values back to lanes (padding lanes 0)."""
    p = np.zeros((lw_pad, c), np.float32)
    for w in range(ow):
        p[w * c:(w + 1) * c, :] += np.eye(c, dtype=np.float32)
    return jnp.asarray(p), jnp.asarray(np.ascontiguousarray(p.T))


def pack_params(params, batch, height, width):
    """One-time conversion of PyTorch-layout params into kernel-ready VMEM operands."""
    cfgs, flat = [], []
    h, w = height, width
    cin = int(params[0]["w"].shape[1])
    lw_in_pad = _round_up(w * cin, LANE)
    lw0_pad = lw_in_pad
    for layer in params:
        s = layer["stride"]
        cout, cin_l = int(layer["w"].shape[0]), int(layer["w"].shape[1])
        assert cin_l == cin
        oh = (h + 2 * PADW - KW) // s + 1
        ow = (w + 2 * PADW - KW) // s + 1
        assert oh >= 2 and ow >= 2, "spatial size too small for the k=4,p=1 conv chain"
        lw_out_pad = _round_up(ow * cout, LANE)
        arrs = [_stacked_weights(layer["w"], w, ow, s, lw_in_pad, lw_out_pad)]
        if layer["kind"] in ("bias_leaky", "bias_none"):
            b = jnp.zeros((1, lw_out_pad), jnp.float32)
            b = b.at[0, :ow * cout].set(jnp.tile(layer["b"], ow))   # lane-tiled bias (tiny)
            arrs.append(b)
        else:
            pool, pool_t = _channel_pool(ow, cout, lw_out_pad)
            arrs += [layer["gamma"].reshape(1, cout), layer["beta"].reshape(1, cout),
                     pool, pool_t]
        cfgs.append(dict(kind=layer["kind"], h_in=h, oh=oh, ow=ow, cout=cout,
                         stride=s, lw_in=lw_in_pad, lw_out=lw_out_pad,
                         taps=_tap_plans(h, oh, s), n_args=len(arrs)))
        flat += arrs
        h, w, cin, lw_in_pad = oh, ow, cout, lw_out_pad

    # a layer's output only needs a VMEM scratch ref if its consumer reads with stride>1
    for li in range(len(cfgs) - 1):
        cfgs[li]["store_out"] = cfgs[li + 1]["stride"] > 1
    cfgs[-1]["store_out"] = False
    return cfgs, flat, lw0_pad


# ------------------------------ fused kernel -------------------------------

def _make_fused_kernel(cfgs, batch):
    n_layers = len(cfgs)

    def mm(a, b):
        return jnp.dot(a.astype(MATMUL_DTYPE), b.astype(MATMUL_DTYPE),
                       preferred_element_type=jnp.float32)

    def gather_taps(src, src_is_ref, cfg):
        """Lane-concat the KW vertical tap slabs -> (batch*OH, KW*lw_in)."""
        h_in, s, lw = cfg["h_in"], cfg["stride"], cfg["lw_in"]
        zero_row = jnp.zeros((1, lw), jnp.float32)
        taps = []
        for kind, start_off, cnt in cfg["taps"]:
            pieces = []
            for n in range(batch):
                start = n * h_in + start_off
                if src_is_ref:
                    if s > 1:
                        blk = src[pl.ds(start, cnt, s), :]   # strided sublane read
                    else:
                        blk = src[pl.ds(start, cnt), :]
                else:                                        # value input (stride-1 only)
                    blk = src[start:start + cnt, :]
                if kind == "top":
                    pieces += [zero_row, blk]                # virtual top padding row
                elif kind == "bottom":
                    pieces += [blk, zero_row]                # virtual bottom padding row
                else:
                    pieces.append(blk)
            taps.append(pieces[0] if len(pieces) == 1
                        else jnp.concatenate(pieces, axis=0))
        return jnp.concatenate(taps, axis=1)                 # tile-aligned lane concat

    def kernel(*refs):
        idx = 0
        x_ref = refs[idx]; idx += 1
        layer_refs = []
        for cfg in cfgs:
            layer_refs.append(refs[idx: idx + cfg["n_args"]])
            idx += cfg["n_args"]
        out_ref = refs[idx]; idx += 1
        scratch = refs[idx:]

        src, src_is_ref, scratch_i = x_ref, True, 0
        for li, cfg in enumerate(cfgs):
            lr = layer_refs[li]
            oh, ow = cfg["oh"], cfg["ow"]

            # conv: one MXU contraction per layer over the 4 lane-concatenated taps
            x_cat = gather_taps(src, src_is_ref, cfg)        # (batch*oh, KW*lw_in)
            acc = mm(x_cat, lr[0][...])                      # (batch*oh, lw_out) f32

            kind = cfg["kind"]
            if kind in ("bias_leaky", "bias_none"):
                acc = acc + lr[1][...]
                if kind == "bias_leaky":
                    acc = jnp.where(acc >= 0.0, acc, LEAKY_SLOPE * acc)
            else:  # "bn_leaky": train-mode BatchNorm fused as 2 small matmuls
                gamma, beta = lr[1][...], lr[2][...]
                pool, pool_t = lr[3][...], lr[4][...]
                inv_cnt = 1.0 / float(batch * oh * ow)
                sums = jnp.concatenate(
                    [jnp.sum(acc, axis=0, keepdims=True),
                     jnp.sum(acc * acc, axis=0, keepdims=True)], axis=0)     # (2, lw_out)
                ch = jnp.dot(sums, pool, preferred_element_type=jnp.float32)  # (2, cout)
                mean = ch[0:1] * inv_cnt
                var = ch[1:2] * inv_cnt - mean * mean          # biased variance (f32)
                scale = gamma * lax.rsqrt(var + BN_EPS)        # EUP rsqrt
                shift = beta - mean * scale
                ss = jnp.concatenate([scale, shift], axis=0)   # (2, cout)
                bc = jnp.dot(ss, pool_t, preferred_element_type=jnp.float32)  # (2, lw_out)
                acc = acc * bc[0:1] + bc[1:2]
                acc = jnp.where(acc >= 0.0, acc, LEAKY_SLOPE * acc)

            if li == n_layers - 1:
                out_ref[...] = acc.astype(out_ref.dtype)       # lane-dense final store
            elif cfg["store_out"]:
                scratch[scratch_i][...] = acc                  # dense, lane-aligned store
                src, src_is_ref = scratch[scratch_i], True
                scratch_i += 1
            else:
                src, src_is_ref = acc, False                   # consumed by value slicing

    return kernel


# ------------------------------- forward ----------------------------------

def nlayer_discriminator_forward(x_nchw, cfgs, flat_args, lw0_pad):
    """Fused forward: one pallas_call for the whole discriminator."""
    batch, cin, height, width = x_nchw.shape

    # entry layout plumbing (cheap, once per forward): NCHW -> (N*H, W*Cin), lane padded
    x = jnp.transpose(x_nchw, (0, 2, 3, 1)).astype(jnp.float32)
    x2d = x.reshape(batch * height, width * cin)
    if lw0_pad > width * cin:
        x2d = jnp.pad(x2d, ((0, 0), (0, lw0_pad - width * cin)))

    last = cfgs[-1]
    out_shape = jax.ShapeDtypeStruct((batch * last["oh"], last["lw_out"]), jnp.float32)
    scratch_shapes = [pltpu.VMEM((batch * cfg["oh"], cfg["lw_out"]), jnp.float32)
                      for cfg in cfgs[:-1] if cfg["store_out"]]

    y = pl.pallas_call(
        _make_fused_kernel(cfgs, batch),
        out_shape=out_shape,
        scratch_shapes=scratch_shapes,
    )(x2d, *flat_args)

    # lane-dense (N*OH, 128) -> real lanes -> NCHW
    y = y[:, :last["ow"] * last["cout"]]
    return y.reshape(batch, last["oh"], last["ow"], last["cout"]).transpose(0, 3, 1, 2)


# --------------------------- pure-JAX reference ----------------------------

def reference_forward(x_nchw, params):
    x = jnp.transpose(x_nchw, (0, 2, 3, 1)).astype(jnp.float32)
    for layer in params:
        w_hwio = jnp.transpose(layer["w"], (2, 3, 1, 0))
        y = lax.conv_general_dilated(
            x, w_hwio, window_strides=(layer["stride"], layer["stride"]),
            padding=[(PADW, PADW), (PADW, PADW)],
            dimension_numbers=("NHWC", "HWIO", "NHWC"))
        if layer["kind"] in ("bias_leaky", "bias_none"):
            y = y + layer["b"]
            if layer["kind"] == "bias_leaky":
                y = jnp.where(y >= 0, y, LEAKY_SLOPE * y)
        else:
            mean = jnp.mean(y, axis=(0, 1, 2), keepdims=True)
            var = jnp.mean(jnp.square(y - mean), axis=(0, 1, 2), keepdims=True)
            y = (y - mean) * (layer["gamma"] * lax.rsqrt(var + BN_EPS)) + layer["beta"]
            y = jnp.where(y >= 0, y, LEAKY_SLOPE * y)
        x = y
    return jnp.transpose(x, (0, 3, 1, 2))


# --------------------------------- main ------------------------------------

if __name__ == "__main__":
    input_nc, ndf, n_layers = 4, 8, 3
    batch, height, width = 2, 32, 32   # spatial >= 32 keeps the two stride-1 k=4 convs valid

    key = jax.random.PRNGKey(0)
    kp, kx = jax.random.split(key)
    params = init_params(kp, input_nc, ndf, n_layers)
    x = jax.random.normal(kx, (batch, input_nc, height, width), dtype=jnp.float32)

    # one-time packing of all constant operands (outside the per-forward path)
    cfgs, flat_args, lw0_pad = pack_params(params, batch, height, width)

    fwd = jax.jit(lambda xx, ff: nlayer_discriminator_forward(xx, cfgs, ff, lw0_pad))
    out = jax.block_until_ready(fwd(x, flat_args))

    ref = jax.block_until_ready(reference_forward(x, params))
    assert out.shape == ref.shape == (batch, 1, 2, 2), (out.shape, ref.shape)
    err = float(jnp.max(jnp.abs(out - ref)))
    assert jnp.allclose(out, ref, rtol=2e-3, atol=2e-3), f"mismatch vs reference: {err}"
    print("KERNEL_OK")
</pallas_src>

<mosaic_0001>
module attributes {stable_mosaic.version = 11 : i64} {
  func.func @kernel(%arg0: memref<64x128xf32, #tpu.memory_space<vmem>>, %arg1: memref<512x128xf32, #tpu.memory_space<vmem>>, %arg2: memref<1x128xf32, #tpu.memory_space<vmem>>, %arg3: memref<512x128xf32, #tpu.memory_space<vmem>>, %arg4: memref<1x16xf32, #tpu.memory_space<vmem>>, %arg5: memref<1x16xf32, #tpu.memory_space<vmem>>, %arg6: memref<128x16xf32, #tpu.memory_space<vmem>>, %arg7: memref<16x128xf32, #tpu.memory_space<vmem>>, %arg8: memref<512x128xf32, #tpu.memory_space<vmem>>, %arg9: memref<1x32xf32, #tpu.memory_space<vmem>>, %arg10: memref<1x32xf32, #tpu.memory_space<vmem>>, %arg11: memref<128x32xf32, #tpu.memory_space<vmem>>, %arg12: memref<32x128xf32, #tpu.memory_space<vmem>>, %arg13: memref<512x256xf32, #tpu.memory_space<vmem>>, %arg14: memref<1x64xf32, #tpu.memory_space<vmem>>, %arg15: memref<1x64xf32, #tpu.memory_space<vmem>>, %arg16: memref<256x64xf32, #tpu.memory_space<vmem>>, %arg17: memref<64x256xf32, #tpu.memory_space<vmem>>, %arg18: memref<1024x128xf32, #tpu.memory_space<vmem>>, %arg19: memref<1x128xf32, #tpu.memory_space<vmem>>, %arg20: memref<4x128xf32, #tpu.memory_space<vmem>>, %arg21: memref<32x128xf32, #tpu.memory_space<vmem>>, %arg22: memref<16x128xf32, #tpu.memory_space<vmem>>) attributes {dimension_semantics = [], scalar_prefetch = 0 : i64, scratch_operands = 2 : i64, tpu.core_type = #tpu.core_type<tc>} {
    %cst = arith.constant 0.000000e+00 : f32
    %0 = vector.broadcast %cst : f32 to vector<1x128xf32>
    %c1 = arith.constant 1 : index
    %c0 = arith.constant 0 : index
    %1 = tpu.strided_load %arg0[%c1, %c0] {strides = array<i32: 2, 1>} : memref<64x128xf32, #tpu.memory_space<vmem>>, vector<15x128xf32>
    %c33 = arith.constant 33 : index
    %c0_0 = arith.constant 0 : index
    %2 = tpu.strided_load %arg0[%c33, %c0_0] {strides = array<i32: 2, 1>} : memref<64x128xf32, #tpu.memory_space<vmem>>, vector<15x128xf32>
    %3 = tpu.concatenate %0, %1, %0, %2 in 0 : vector<1x128xf32>, vector<15x128xf32>, vector<1x128xf32>, vector<15x128xf32> -> vector<32x128xf32>
    %c0_1 = arith.constant 0 : index
    %c0_2 = arith.constant 0 : index
    %4 = tpu.strided_load %arg0[%c0_1, %c0_2] {strides = array<i32: 2, 1>} : memref<64x128xf32, #tpu.memory_space<vmem>>, vector<16x128xf32>
    %c32 = arith.constant 32 : index
    %c0_3 = arith.constant 0 : index
    %5 = tpu.strided_load %arg0[%c32, %c0_3] {strides = array<i32: 2, 1>} : memref<64x128xf32, #tpu.memory_space<vmem>>, vector<16x128xf32>
    %6 = tpu.concatenate %4, %5 in 0 : vector<16x128xf32>, vector<16x128xf32> -> vector<32x128xf32>
    %c1_4 = arith.constant 1 : index
    %c0_5 = arith.constant 0 : index
    %7 = tpu.strided_load %arg0[%c1_4, %c0_5] {strides = array<i32: 2, 1>} : memref<64x128xf32, #tpu.memory_space<vmem>>, vector<16x128xf32>
    %c33_6 = arith.constant 33 : index
    %c0_7 = arith.constant 0 : index
    %8 = tpu.strided_load %arg0[%c33_6, %c0_7] {strides = array<i32: 2, 1>} : memref<64x128xf32, #tpu.memory_space<vmem>>, vector<16x128xf32>
    %9 = tpu.concatenate %7, %8 in 0 : vector<16x128xf32>, vector<16x128xf32> -> vector<32x128xf32>
    %c2 = arith.constant 2 : index
    %c0_8 = arith.constant 0 : index
    %10 = tpu.strided_load %arg0[%c2, %c0_8] {strides = array<i32: 2, 1>} : memref<64x128xf32, #tpu.memory_space<vmem>>, vector<15x128xf32>
    %c34 = arith.constant 34 : index
    %c0_9 = arith.constant 0 : index
    %11 = tpu.strided_load %arg0[%c34, %c0_9] {strides = array<i32: 2, 1>} : memref<64x128xf32, #tpu.memory_space<vmem>>, vector<15x128xf32>
    %12 = tpu.concatenate %10, %0, %11, %0 in 0 : vector<15x128xf32>, vector<1x128xf32>, vector<15x128xf32>, vector<1x128xf32> -> vector<32x128xf32>
    %13 = tpu.concatenate %3, %6, %9, %12 in 1 : vector<32x128xf32>, vector<32x128xf32>, vector<32x128xf32>, vector<32x128xf32> -> vector<32x512xf32>
    %c0_10 = arith.constant 0 : index
    %c0_11 = arith.constant 0 : index
    %14 = vector.load %arg1[%c0_10, %c0_11] : memref<512x128xf32, #tpu.memory_space<vmem>>, vector<512x128xf32>
    %cst_12 = arith.constant dense<0.000000e+00> : vector<32x128xf32>
    %15 = tpu.matmul %13, %14, %cst_12 {dimension_numbers = #tpu.dot_dimension_numbers<[1], [0], [0], [1], [0, 0, 1, 1], [], []>} : vector<32x512xf32>, vector<512x128xf32>, vector<32x128xf32> -> vector<32x128xf32>
    %c0_13 = arith.constant 0 : index
    %c0_14 = arith.constant 0 : index
    %16 = vector.load %arg2[%c0_13, %c0_14] : memref<1x128xf32, #tpu.memory_space<vmem>>, vector<1x128xf32>
    %17 = vector.broadcast %16 : vector<1x128xf32> to vector<32x128xf32>
    %18 = arith.addf %15, %17 : vector<32x128xf32>
    %cst_15 = arith.constant 0.000000e+00 : f32
    %19 = vector.broadcast %cst_15 : f32 to vector<32x128xf32>
    %20 = arith.cmpf oge, %18, %19 : vector<32x128xf32>
    %cst_16 = arith.constant 2.000000e-01 : f32
    %21 = vector.broadcast %cst_16 : f32 to vector<32x128xf32>
    %22 = arith.mulf %21, %18 : vector<32x128xf32>
    %23 = arith.select %20, %18, %22 : vector<32x128xi1>, vector<32x128xf32>
    %c0_17 = arith.constant 0 : index
    %c0_18 = arith.constant 0 : index
    %24 = vector.load %arg21[%c0_17, %c0_18] : memref<32x128xf32, #tpu.memory_space<vmem>>, vector<32x128xf32>
    tpu.vector_store %arg21[%c0_17, %c0_18], %23 {strides = array<i32>} : memref<32x128xf32, #tpu.memory_space<vmem>>, vector<32x128xf32>,
    %cst_19 = arith.constant 0.000000e+00 : f32
    %25 = vector.broadcast %cst_19 : f32 to vector<1x128xf32>
    %c1_20 = arith.constant 1 : index
    %c0_21 = arith.constant 0 : index
    %26 = tpu.strided_load %arg21[%c1_20, %c0_21] {strides = array<i32: 2, 1>} : memref<32x128xf32, #tpu.memory_space<vmem>>, vector<7x128xf32>
    %c17 = arith.constant 17 : index
    %c0_22 = arith.constant 0 : index
    %27 = tpu.strided_load %arg21[%c17, %c0_22] {strides = array<i32: 2, 1>} : memref<32x128xf32, #tpu.memory_space<vmem>>, vector<7x128xf32>
    %28 = tpu.concatenate %25, %26, %25, %27 in 0 : vector<1x128xf32>, vector<7x128xf32>, vector<1x128xf32>, vector<7x128xf32> -> vector<16x128xf32>
    %c0_23 = arith.constant 0 : index
    %c0_24 = arith.constant 0 : index
    %29 = tpu.strided_load %arg21[%c0_23, %c0_24] {strides = array<i32: 2, 1>} : memref<32x128xf32, #tpu.memory_space<vmem>>, vector<8x128xf32>
    %c16 = arith.constant 16 : index
    %c0_25 = arith.constant 0 : index
    %30 = tpu.strided_load %arg21[%c16, %c0_25] {strides = array<i32: 2, 1>} : memref<32x128xf32, #tpu.memory_space<vmem>>, vector<8x128xf32>
    %31 = tpu.concatenate %29, %30 in 0 : vector<8x128xf32>, vector<8x128xf32> -> vector<16x128xf32>
    %c1_26 = arith.constant 1 : index
    %c0_27 = arith.constant 0 : index
    %32 = tpu.strided_load %arg21[%c1_26, %c0_27] {strides = array<i32: 2, 1>} : memref<32x128xf32, #tpu.memory_space<vmem>>, vector<8x128xf32>
    %c17_28 = arith.constant 17 : index
    %c0_29 = arith.constant 0 : index
    %33 = tpu.strided_load %arg21[%c17_28, %c0_29] {strides = array<i32: 2, 1>} : memref<32x128xf32, #tpu.memory_space<vmem>>, vector<8x128xf32>
    %34 = tpu.concatenate %32, %33 in 0 : vector<8x128xf32>, vector<8x128xf32> -> vector<16x128xf32>
    %c2_30 = arith.constant 2 : index
    %c0_31 = arith.constant 0 : index
    %35 = tpu.strided_load %arg21[%c2_30, %c0_31] {strides = array<i32: 2, 1>} : memref<32x128xf32, #tpu.memory_space<vmem>>, vector<7x128xf32>
    %c18 = arith.constant 18 : index
    %c0_32 = arith.constant 0 : index
    %36 = tpu.strided_load %arg21[%c18, %c0_32] {strides = array<i32: 2, 1>} : memref<32x128xf32, #tpu.memory_space<vmem>>, vector<7x128xf32>
    %37 = tpu.concatenate %35, %25, %36, %25 in 0 : vector<7x128xf32>, vector<1x128xf32>, vector<7x128xf32>, vector<1x128xf32> -> vector<16x128xf32>
    %38 = tpu.concatenate %28, %31, %34, %37 in 1 : vector<16x128xf32>, vector<16x128xf32>, vector<16x128xf32>, vector<16x128xf32> -> vector<16x512xf32>
    %c0_33 = arith.constant 0 : index
    %c0_34 = arith.constant 0 : index
    %39 = vector.load %arg3[%c0_33, %c0_34] : memref<512x128xf32, #tpu.memory_space<vmem>>, vector<512x128xf32>
    %cst_35 = arith.constant dense<0.000000e+00> : vector<16x128xf32>
    %40 = tpu.matmul %38, %39, %cst_35 {dimension_numbers = #tpu.dot_dimension_numbers<[1], [0], [0], [1], [0, 0, 1, 1], [], []>} : vector<16x512xf32>, vector<512x128xf32>, vector<16x128xf32> -> vector<16x128xf32>
    %c0_36 = arith.constant 0 : index
    %c0_37 = arith.constant 0 : index
    %41 = vector.load %arg4[%c0_36, %c0_37] : memref<1x16xf32, #tpu.memory_space<vmem>>, vector<1x16xf32>
    %c0_38 = arith.constant 0 : index
    %c0_39 = arith.constant 0 : index
    %42 = vector.load %arg5[%c0_38, %c0_39] : memref<1x16xf32, #tpu.memory_space<vmem>>, vector<1x16xf32>
    %c0_40 = arith.constant 0 : index
    %c0_41 = arith.constant 0 : index
    %43 = vector.load %arg6[%c0_40, %c0_41] : memref<128x16xf32, #tpu.memory_space<vmem>>, vector<128x16xf32>
    %c0_42 = arith.constant 0 : index
    %c0_43 = arith.constant 0 : index
    %44 = vector.load %arg7[%c0_42, %c0_43] : memref<16x128xf32, #tpu.memory_space<vmem>>, vector<16x128xf32>
    %cst_44 = arith.constant dense<0.000000e+00> : vector<128xf32>
    %45 = vector.multi_reduction <add>, %40, %cst_44 [0] : vector<16x128xf32> to vector<128xf32>
    %46 = vector.shape_cast %45 : vector<128xf32> to vector<1x128xf32>
    %47 = arith.mulf %40, %40 : vector<16x128xf32>
    %cst_45 = arith.constant dense<0.000000e+00> : vector<128xf32>
    %48 = vector.multi_reduction <add>, %47, %cst_45 [0] : vector<16x128xf32> to vector<128xf32>
    %49 = vector.shape_cast %48 : vector<128xf32> to vector<1x128xf32>
    %50 = tpu.concatenate %46, %49 in 0 : vector<1x128xf32>, vector<1x128xf32> -> vector<2x128xf32>
    %cst_46 = arith.constant dense<0.000000e+00> : vector<2x16xf32>
    %51 = tpu.matmul %50, %43, %cst_46 {dimension_numbers = #tpu.dot_dimension_numbers<[1], [0], [0], [1], [0, 0, 1, 1], [], []>} : vector<2x128xf32>, vector<128x16xf32>, vector<2x16xf32> -> vector<2x16xf32>
    %52 = vector.extract_strided_slice %51 {offsets = [0, 0], sizes = [1, 16], strides = [1, 1]} : vector<2x16xf32> to vector<1x16xf32>
    %cst_47 = arith.constant 7.812500e-03 : f32
    %53 = vector.broadcast %cst_47 : f32 to vector<1x16xf32>
    %54 = arith.mulf %52, %53 : vector<1x16xf32>
    %55 = vector.extract_strided_slice %51 {offsets = [1, 0], sizes = [1, 16], strides = [1, 1]} : vector<2x16xf32> to vector<1x16xf32>
    %cst_48 = arith.constant 7.812500e-03 : f32
    %56 = vector.broadcast %cst_48 : f32 to vector<1x16xf32>
    %57 = arith.mulf %55, %56 : vector<1x16xf32>
    %58 = arith.mulf %54, %54 : vector<1x16xf32>
    %59 = arith.subf %57, %58 : vector<1x16xf32>
    %cst_49 = arith.constant 9.99999974E-6 : f32
    %60 = vector.broadcast %cst_49 : f32 to vector<1x16xf32>
    %61 = arith.addf %59, %60 : vector<1x16xf32>
    %62 = math.rsqrt %61 : vector<1x16xf32>
    %63 = arith.mulf %41, %62 : vector<1x16xf32>
    %64 = arith.mulf %54, %63 : vector<1x16xf32>
    %65 = arith.subf %42, %64 : vector<1x16xf32>
    %66 = tpu.concatenate %63, %65 in 0 : vector<1x16xf32>, vector<1x16xf32> -> vector<2x16xf32>
    %cst_50 = arith.constant dense<0.000000e+00> : vector<2x128xf32>
    %67 = tpu.matmul %66, %44, %cst_50 {dimension_numbers = #tpu.dot_dimension_numbers<[1], [0], [0], [1], [0, 0, 1, 1], [], []>} : vector<2x16xf32>, vector<16x128xf32>, vector<2x128xf32> -> vector<2x128xf32>
    %68 = vector.extract_strided_slice %67 {offsets = [0, 0], sizes = [1, 128], strides = [1, 1]} : vector<2x128xf32> to vector<1x128xf32>
    %69 = vector.broadcast %68 : vector<1x128xf32> to vector<16x128xf32>
    %70 = arith.mulf %40, %69 : vector<16x128xf32>
    %71 = vector.extract_strided_slice %67 {offsets = [1, 0], sizes = [1, 128], strides = [1, 1]} : vector<2x128xf32> to vector<1x128xf32>
    %72 = vector.broadcast %71 : vector<1x128xf32> to vector<16x128xf32>
    %73 = arith.addf %70, %72 : vector<16x128xf32>
    %cst_51 = arith.constant 0.000000e+00 : f32
    %74 = vector.broadcast %cst_51 : f32 to vector<16x128xf32>
    %75 = arith.cmpf oge, %73, %74 : vector<16x128xf32>
    %cst_52 = arith.constant 2.000000e-01 : f32
    %76 = vector.broadcast %cst_52 : f32 to vector<16x128xf32>
    %77 = arith.mulf %76, %73 : vector<16x128xf32>
    %78 = arith.select %75, %73, %77 : vector<16x128xi1>, vector<16x128xf32>
    %c0_53 = arith.constant 0 : index
    %c0_54 = arith.constant 0 : index
    %79 = vector.load %arg22[%c0_53, %c0_54] : memref<16x128xf32, #tpu.memory_space<vmem>>, vector<16x128xf32>
    tpu.vector_store %arg22[%c0_53, %c0_54], %78 {strides = array<i32>} : memref<16x128xf32, #tpu.memory_space<vmem>>, vector<16x128xf32>,
    %cst_55 = arith.constant 0.000000e+00 : f32
    %80 = vector.broadcast %cst_55 : f32 to vector<1x128xf32>
    %c1_56 = arith.constant 1 : index
    %c0_57 = arith.constant 0 : index
    %81 = tpu.strided_load %arg22[%c1_56, %c0_57] {strides = array<i32: 2, 1>} : memref<16x128xf32, #tpu.memory_space<vmem>>, vector<3x128xf32>
    %c9 = arith.constant 9 : index
    %c0_58 = arith.constant 0 : index
    %82 = tpu.strided_load %arg22[%c9, %c0_58] {strides = array<i32: 2, 1>} : memref<16x128xf32, #tpu.memory_space<vmem>>, vector<3x128xf32>
    %83 = tpu.concatenate %80, %81, %80, %82 in 0 : vector<1x128xf32>, vector<3x128xf32>, vector<1x128xf32>, vector<3x128xf32> -> vector<8x128xf32>
    %c0_59 = arith.constant 0 : index
    %c0_60 = arith.constant 0 : index
    %84 = tpu.strided_load %arg22[%c0_59, %c0_60] {strides = array<i32: 2, 1>} : memref<16x128xf32, #tpu.memory_space<vmem>>, vector<4x128xf32>
    %c8 = arith.constant 8 : index
    %c0_61 = arith.constant 0 : index
    %85 = tpu.strided_load %arg22[%c8, %c0_61] {strides = array<i32: 2, 1>} : memref<16x128xf32, #tpu.memory_space<vmem>>, vector<4x128xf32>
    %86 = tpu.concatenate %84, %85 in 0 : vector<4x128xf32>, vector<4x128xf32> -> vector<8x128xf32>
    %c1_62 = arith.constant 1 : index
    %c0_63 = arith.constant 0 : index
    %87 = tpu.strided_load %arg22[%c1_62, %c0_63] {strides = array<i32: 2, 1>} : memref<16x128xf32, #tpu.memory_space<vmem>>, vector<4x128xf32>
    %c9_64 = arith.constant 9 : index
    %c0_65 = arith.constant 0 : index
    %88 = tpu.strided_load %arg22[%c9_64, %c0_65] {strides = array<i32: 2, 1>} : memref<16x128xf32, #tpu.memory_space<vmem>>, vector<4x128xf32>
    %89 = tpu.concatenate %87, %88 in 0 : vector<4x128xf32>, vector<4x128xf32> -> vector<8x128xf32>
    %c2_66 = arith.constant 2 : index
    %c0_67 = arith.constant 0 : index
    %90 = tpu.strided_load %arg22[%c2_66, %c0_67] {strides = array<i32: 2, 1>} : memref<16x128xf32, #tpu.memory_space<vmem>>, vector<3x128xf32>
    %c10 = arith.constant 10 : index
    %c0_68 = arith.constant 0 : index
    %91 = tpu.strided_load %arg22[%c10, %c0_68] {strides = array<i32: 2, 1>} : memref<16x128xf32, #tpu.memory_space<vmem>>, vector<3x128xf32>
    %92 = tpu.concatenate %90, %80, %91, %80 in 0 : vector<3x128xf32>, vector<1x128xf32>, vector<3x128xf32>, vector<1x128xf32> -> vector<8x128xf32>
    %93 = tpu.concatenate %83, %86, %89, %92 in 1 : vector<8x128xf32>, vector<8x128xf32>, vector<8x128xf32>, vector<8x128xf32> -> vector<8x512xf32>
    %c0_69 = arith.constant 0 : index
    %c0_70 = arith.constant 0 : index
    %94 = vector.load %arg8[%c0_69, %c0_70] : memref<512x128xf32, #tpu.memory_space<vmem>>, vector<512x128xf32>
    %cst_71 = arith.constant dense<0.000000e+00> : vector<8x128xf32>
    %95 = tpu.matmul %93, %94, %cst_71 {dimension_numbers = #tpu.dot_dimension_numbers<[1], [0], [0], [1], [0, 0, 1, 1], [], []>} : vector<8x512xf32>, vector<512x128xf32>, vector<8x128xf32> -> vector<8x128xf32>
    %c0_72 = arith.constant 0 : index
    %c0_73 = arith.constant 0 : index
    %96 = vector.load %arg9[%c0_72, %c0_73] : memref<1x32xf32, #tpu.memory_space<vmem>>, vector<1x32xf32>
    %c0_74 = arith.constant 0 : index
    %c0_75 = arith.constant 0 : index
    %97 = vector.load %arg10[%c0_74, %c0_75] : memref<1x32xf32, #tpu.memory_space<vmem>>, vector<1x32xf32>
    %c0_76 = arith.constant 0 : index
    %c0_77 = arith.constant 0 : index
    %98 = vector.load %arg11[%c0_76, %c0_77] : memref<128x32xf32, #tpu.memory_space<vmem>>, vector<128x32xf32>
    %c0_78 = arith.constant 0 : index
    %c0_79 = arith.constant 0 : index
    %99 = vector.load %arg12[%c0_78, %c0_79] : memref<32x128xf32, #tpu.memory_space<vmem>>, vector<32x128xf32>
    %cst_80 = arith.constant dense<0.000000e+00> : vector<128xf32>
    %100 = vector.multi_reduction <add>, %95, %cst_80 [0] : vector<8x128xf32> to vector<128xf32>
    %101 = vector.shape_cast %100 : vector<128xf32> to vector<1x128xf32>
    %102 = arith.mulf %95, %95 : vector<8x128xf32>
    %cst_81 = arith.constant dense<0.000000e+00> : vector<128xf32>
    %103 = vector.multi_reduction <add>, %102, %cst_81 [0] : vector<8x128xf32> to vector<128xf32>
    %104 = vector.shape_cast %103 : vector<128xf32> to vector<1x128xf32>
    %105 = tpu.concatenate %101, %104 in 0 : vector<1x128xf32>, vector<1x128xf32> -> vector<2x128xf32>
    %cst_82 = arith.constant dense<0.000000e+00> : vector<2x32xf32>
    %106 = tpu.matmul %105, %98, %cst_82 {dimension_numbers = #tpu.dot_dimension_numbers<[1], [0], [0], [1], [0, 0, 1, 1], [], []>} : vector<2x128xf32>, vector<128x32xf32>, vector<2x32xf32> -> vector<2x32xf32>
    %107 = vector.extract_strided_slice %106 {offsets = [0, 0], sizes = [1, 32], strides = [1, 1]} : vector<2x32xf32> to vector<1x32xf32>
    %cst_83 = arith.constant 3.125000e-02 : f32
    %108 = vector.broadcast %cst_83 : f32 to vector<1x32xf32>
    %109 = arith.mulf %107, %108 : vector<1x32xf32>
    %110 = vector.extract_strided_slice %106 {offsets = [1, 0], sizes = [1, 32], strides = [1, 1]} : vector<2x32xf32> to vector<1x32xf32>
    %cst_84 = arith.constant 3.125000e-02 : f32
    %111 = vector.broadcast %cst_84 : f32 to vector<1x32xf32>
    %112 = arith.mulf %110, %111 : vector<1x32xf32>
    %113 = arith.mulf %109, %109 : vector<1x32xf32>
    %114 = arith.subf %112, %113 : vector<1x32xf32>
    %cst_85 = arith.constant 9.99999974E-6 : f32
    %115 = vector.broadcast %cst_85 : f32 to vector<1x32xf32>
    %116 = arith.addf %114, %115 : vector<1x32xf32>
    %117 = math.rsqrt %116 : vector<1x32xf32>
    %118 = arith.mulf %96, %117 : vector<1x32xf32>
    %119 = arith.mulf %109, %118 : vector<1x32xf32>
    %120 = arith.subf %97, %119 : vector<1x32xf32>
    %121 = tpu.concatenate %118, %120 in 0 : vector<1x32xf32>, vector<1x32xf32> -> vector<2x32xf32>
    %cst_86 = arith.constant dense<0.000000e+00> : vector<2x128xf32>
    %122 = tpu.matmul %121, %99, %cst_86 {dimension_numbers = #tpu.dot_dimension_numbers<[1], [0], [0], [1], [0, 0, 1, 1], [], []>} : vector<2x32xf32>, vector<32x128xf32>, vector<2x128xf32> -> vector<2x128xf32>
    %123 = vector.extract_strided_slice %122 {offsets = [0, 0], sizes = [1, 128], strides = [1, 1]} : vector<2x128xf32> to vector<1x128xf32>
    %124 = vector.broadcast %123 : vector<1x128xf32> to vector<8x128xf32>
    %125 = arith.mulf %95, %124 : vector<8x128xf32>
    %126 = vector.extract_strided_slice %122 {offsets = [1, 0], sizes = [1, 128], strides = [1, 1]} : vector<2x128xf32> to vector<1x128xf32>
    %127 = vector.broadcast %126 : vector<1x128xf32> to vector<8x128xf32>
    %128 = arith.addf %125, %127 : vector<8x128xf32>
    %cst_87 = arith.constant 0.000000e+00 : f32
    %129 = vector.broadcast %cst_87 : f32 to vector<8x128xf32>
    %130 = arith.cmpf oge, %128, %129 : vector<8x128xf32>
    %cst_88 = arith.constant 2.000000e-01 : f32
    %131 = vector.broadcast %cst_88 : f32 to vector<8x128xf32>
    %132 = arith.mulf %131, %128 : vector<8x128xf32>
    %133 = arith.select %130, %128, %132 : vector<8x128xi1>, vector<8x128xf32>
    %cst_89 = arith.constant 0.000000e+00 : f32
    %134 = vector.broadcast %cst_89 : f32 to vector<1x128xf32>
    %135 = vector.extract_strided_slice %133 {offsets = [0, 0], sizes = [2, 128], strides = [1, 1]} : vector<8x128xf32> to vector<2x128xf32>
    %136 = vector.extract_strided_slice %133 {offsets = [4, 0], sizes = [2, 128], strides = [1, 1]} : vector<8x128xf32> to vector<2x128xf32>
    %137 = tpu.concatenate %134, %135, %134, %136 in 0 : vector<1x128xf32>, vector<2x128xf32>, vector<1x128xf32>, vector<2x128xf32> -> vector<6x128xf32>
    %138 = vector.extract_strided_slice %133 {offsets = [0, 0], sizes = [3, 128], strides = [1, 1]} : vector<8x128xf32> to vector<3x128xf32>
    %139 = vector.extract_strided_slice %133 {offsets = [4, 0], sizes = [3, 128], strides = [1, 1]} : vector<8x128xf32> to vector<3x128xf32>
    %140 = tpu.concatenate %138, %139 in 0 : vector<3x128xf32>, vector<3x128xf32> -> vector<6x128xf32>
    %141 = vector.extract_strided_slice %133 {offsets = [1, 0], sizes = [3, 128], strides = [1, 1]} : vector<8x128xf32> to vector<3x128xf32>
    %142 = vector.extract_strided_slice %133 {offsets = [5, 0], sizes = [3, 128], strides = [1, 1]} : vector<8x128xf32> to vector<3x128xf32>
    %143 = tpu.concatenate %141, %142 in 0 : vector<3x128xf32>, vector<3x128xf32> -> vector<6x128xf32>
    %144 = vector.extract_strided_slice %133 {offsets = [2, 0], sizes = [2, 128], strides = [1, 1]} : vector<8x128xf32> to vector<2x128xf32>
    %145 = vector.extract_strided_slice %133 {offsets = [6, 0], sizes = [2, 128], strides = [1, 1]} : vector<8x128xf32> to vector<2x128xf32>
    %146 = tpu.concatenate %144, %134, %145, %134 in 0 : vector<2x128xf32>, vector<1x128xf32>, vector<2x128xf32>, vector<1x128xf32> -> vector<6x128xf32>
    %147 = tpu.concatenate %137, %140, %143, %146 in 1 : vector<6x128xf32>, vector<6x128xf32>, vector<6x128xf32>, vector<6x128xf32> -> vector<6x512xf32>
    %c0_90 = arith.constant 0 : index
    %c0_91 = arith.constant 0 : index
    %148 = vector.load %arg13[%c0_90, %c0_91] : memref<512x256xf32, #tpu.memory_space<vmem>>, vector<512x256xf32>
    %cst_92 = arith.constant dense<0.000000e+00> : vector<6x256xf32>
    %149 = tpu.matmul %147, %148, %cst_92 {dimension_numbers = #tpu.dot_dimension_numbers<[1], [0], [0], [1], [0, 0, 1, 1], [], []>} : vector<6x512xf32>, vector<512x256xf32>, vector<6x256xf32> -> vector<6x256xf32>
    %c0_93 = arith.constant 0 : index
    %c0_94 = arith.constant 0 : index
    %150 = vector.load %arg14[%c0_93, %c0_94] : memref<1x64xf32, #tpu.memory_space<vmem>>, vector<1x64xf32>
    %c0_95 = arith.constant 0 : index
    %c0_96 = arith.constant 0 : index
    %151 = vector.load %arg15[%c0_95, %c0_96] : memref<1x64xf32, #tpu.memory_space<vmem>>, vector<1x64xf32>
    %c0_97 = arith.constant 0 : index
    %c0_98 = arith.constant 0 : index
    %152 = vector.load %arg16[%c0_97, %c0_98] : memref<256x64xf32, #tpu.memory_space<vmem>>, vector<256x64xf32>
    %c0_99 = arith.constant 0 : index
    %c0_100 = arith.constant 0 : index
    %153 = vector.load %arg17[%c0_99, %c0_100] : memref<64x256xf32, #tpu.memory_space<vmem>>, vector<64x256xf32>
    %cst_101 = arith.constant dense<0.000000e+00> : vector<256xf32>
    %154 = vector.multi_reduction <add>, %149, %cst_101 [0] : vector<6x256xf32> to vector<256xf32>
    %155 = vector.shape_cast %154 : vector<256xf32> to vector<1x256xf32>
    %156 = arith.mulf %149, %149 : vector<6x256xf32>
    %cst_102 = arith.constant dense<0.000000e+00> : vector<256xf32>
    %157 = vector.multi_reduction <add>, %156, %cst_102 [0] : vector<6x256xf32> to vector<256xf32>
    %158 = vector.shape_cast %157 : vector<256xf32> to vector<1x256xf32>
    %159 = tpu.concatenate %155, %158 in 0 : vector<1x256xf32>, vector<1x256xf32> -> vector<2x256xf32>
    %cst_103 = arith.constant dense<0.000000e+00> : vector<2x64xf32>
    %160 = tpu.matmul %159, %152, %cst_103 {dimension_numbers = #tpu.dot_dimension_numbers<[1], [0], [0], [1], [0, 0, 1, 1], [], []>} : vector<2x256xf32>, vector<256x64xf32>, vector<2x64xf32> -> vector<2x64xf32>
    %161 = vector.extract_strided_slice %160 {offsets = [0, 0], sizes = [1, 64], strides = [1, 1]} : vector<2x64xf32> to vector<1x64xf32>
    %cst_104 = arith.constant 0.055555556 : f32
    %162 = vector.broadcast %cst_104 : f32 to vector<1x64xf32>
    %163 = arith.mulf %161, %162 : vector<1x64xf32>
    %164 = vector.extract_strided_slice %160 {offsets = [1, 0], sizes = [1, 64], strides = [1, 1]} : vector<2x64xf32> to vector<1x64xf32>
    %cst_105 = arith.constant 0.055555556 : f32
    %165 = vector.broadcast %cst_105 : f32 to vector<1x64xf32>
    %166 = arith.mulf %164, %165 : vector<1x64xf32>
    %167 = arith.mulf %163, %163 : vector<1x64xf32>
    %168 = arith.subf %166, %167 : vector<1x64xf32>
    %cst_106 = arith.constant 9.99999974E-6 : f32
    %169 = vector.broadcast %cst_106 : f32 to vector<1x64xf32>
    %170 = arith.addf %168, %169 : vector<1x64xf32>
    %171 = math.rsqrt %170 : vector<1x64xf32>
    %172 = arith.mulf %150, %171 : vector<1x64xf32>
    %173 = arith.mulf %163, %172 : vector<1x64xf32>
    %174 = arith.subf %151, %173 : vector<1x64xf32>
    %175 = tpu.concatenate %172, %174 in 0 : vector<1x64xf32>, vector<1x64xf32> -> vector<2x64xf32>
    %cst_107 = arith.constant dense<0.000000e+00> : vector<2x256xf32>
    %176 = tpu.matmul %175, %153, %cst_107 {dimension_numbers = #tpu.dot_dimension_numbers<[1], [0], [0], [1], [0, 0, 1, 1], [], []>} : vector<2x64xf32>, vector<64x256xf32>, vector<2x256xf32> -> vector<2x256xf32>
    %177 = vector.extract_strided_slice %176 {offsets = [0, 0], sizes = [1, 256], strides = [1, 1]} : vector<2x256xf32> to vector<1x256xf32>
    %178 = vector.broadcast %177 : vector<1x256xf32> to vector<6x256xf32>
    %179 = arith.mulf %149, %178 : vector<6x256xf32>
    %180 = vector.extract_strided_slice %176 {offsets = [1, 0], sizes = [1, 256], strides = [1, 1]} : vector<2x256xf32> to vector<1x256xf32>
    %181 = vector.broadcast %180 : vector<1x256xf32> to vector<6x256xf32>
    %182 = arith.addf %179, %181 : vector<6x256xf32>
    %cst_108 = arith.constant 0.000000e+00 : f32
    %183 = vector.broadcast %cst_108 : f32 to vector<6x256xf32>
    %184 = arith.cmpf oge, %182, %183 : vector<6x256xf32>
    %cst_109 = arith.constant 2.000000e-01 : f32
    %185 = vector.broadcast %cst_109 : f32 to vector<6x256xf32>
    %186 = arith.mulf %185, %182 : vector<6x256xf32>
    %187 = arith.select %184, %182, %186 : vector<6x256xi1>, vector<6x256xf32>
    %cst_110 = arith.constant 0.000000e+00 : f32
    %188 = vector.broadcast %cst_110 : f32 to vector<1x256xf32>
    %189 = vector.extract_strided_slice %187 {offsets = [0, 0], sizes = [1, 256], strides = [1, 1]} : vector<6x256xf32> to vector<1x256xf32>
    %190 = vector.extract_strided_slice %187 {offsets = [3, 0], sizes = [1, 256], strides = [1, 1]} : vector<6x256xf32> to vector<1x256xf32>
    %191 = tpu.concatenate %188, %189, %188, %190 in 0 : vector<1x256xf32>, vector<1x256xf32>, vector<1x256xf32>, vector<1x256xf32> -> vector<4x256xf32>
    %192 = vector.extract_strided_slice %187 {offsets = [0, 0], sizes = [2, 256], strides = [1, 1]} : vector<6x256xf32> to vector<2x256xf32>
    %193 = vector.extract_strided_slice %187 {offsets = [3, 0], sizes = [2, 256], strides = [1, 1]} : vector<6x256xf32> to vector<2x256xf32>
    %194 = tpu.concatenate %192, %193 in 0 : vector<2x256xf32>, vector<2x256xf32> -> vector<4x256xf32>
    %195 = vector.extract_strided_slice %187 {offsets = [1, 0], sizes = [2, 256], strides = [1, 1]} : vector<6x256xf32> to vector<2x256xf32>
    %196 = vector.extract_strided_slice %187 {offsets = [4, 0], sizes = [2, 256], strides = [1, 1]} : vector<6x256xf32> to vector<2x256xf32>
    %197 = tpu.concatenate %195, %196 in 0 : vector<2x256xf32>, vector<2x256xf32> -> vector<4x256xf32>
    %198 = vector.extract_strided_slice %187 {offsets = [2, 0], sizes = [1, 256], strides = [1, 1]} : vector<6x256xf32> to vector<1x256xf32>
    %199 = vector.extract_strided_slice %187 {offsets = [5, 0], sizes = [1, 256], strides = [1, 1]} : vector<6x256xf32> to vector<1x256xf32>
    %200 = tpu.concatenate %198, %188, %199, %188 in 0 : vector<1x256xf32>, vector<1x256xf32>, vector<1x256xf32>, vector<1x256xf32> -> vector<4x256xf32>
    %201 = tpu.concatenate %191, %194, %197, %200 in 1 : vector<4x256xf32>, vector<4x256xf32>, vector<4x256xf32>, vector<4x256xf32> -> vector<4x1024xf32>
    %c0_111 = arith.constant 0 : index
    %c0_112 = arith.constant 0 : index
    %202 = vector.load %arg18[%c0_111, %c0_112] : memref<1024x128xf32, #tpu.memory_space<vmem>>, vector<1024x128xf32>
    %cst_113 = arith.constant dense<0.000000e+00> : vector<4x128xf32>
    %203 = tpu.matmul %201, %202, %cst_113 {dimension_numbers = #tpu.dot_dimension_numbers<[1], [0], [0], [1], [0, 0, 1, 1], [], []>} : vector<4x1024xf32>, vector<1024x128xf32>, vector<4x128xf32> -> vector<4x128xf32>
    %c0_114 = arith.constant 0 : index
    %c0_115 = arith.constant 0 : index
    %204 = vector.load %arg19[%c0_114, %c0_115] : memref<1x128xf32, #tpu.memory_space<vmem>>, vector<1x128xf32>
    %205 = vector.broadcast %204 : vector<1x128xf32> to vector<4x128xf32>
    %206 = arith.addf %203, %205 : vector<4x128xf32>
    %c0_116 = arith.constant 0 : index
    %c0_117 = arith.constant 0 : index
    %207 = vector.load %arg20[%c0_116, %c0_117] : memref<4x128xf32, #tpu.memory_space<vmem>>, vector<4x128xf32>
    tpu.vector_store %arg20[%c0_116, %c0_117], %206 {strides = array<i32>} : memref<4x128xf32, #tpu.memory_space<vmem>>, vector<4x128xf32>,
    return
  }
}

</mosaic_0001>

<llo_original>
// kernel: _lambda_.1
$region0: #{_lambda_.1}
  #allocation0 [shape = 'u32[]', space=smem, size = 0x4, offset = 0x4, fixed_abs, tag = 'smem constant byte address 0x4 - core index']
  #allocation1 [shape = 'u32[72,128]{1,0:T(1,128)}', space=vmem, size = 0x9000, scoped, tag = 'internal scratch']
  #allocation2 [shape = 'f32[32,128]{1,0:T(8,128)}', space=vmem, size = 0x4000, scoped, tag = 'scratch operand']
  #allocation3 [shape = 'f32[16,128]{1,0:T(8,128)}', space=vmem, size = 0x2000, scoped, tag = 'scratch operand']
  %s0 = inlined_call_operand.vmem [shape: f32[64,128], index: 0, kind: input, shape index: {}]
  %s1 = inlined_call_operand.vmem [shape: f32[512,128], index: 1, kind: input, shape index: {}]
  %s2 = inlined_call_operand.vmem [shape: f32[1,128], index: 2, kind: input, shape index: {}]
  %s3 = inlined_call_operand.hbm [shape: f32[512,128], index: 3, kind: input, shape index: {}]
  %s4 = inlined_call_operand.vmem [shape: f32[1,16], index: 4, kind: input, shape index: {}]
  %s5 = inlined_call_operand.vmem [shape: f32[1,16], index: 5, kind: input, shape index: {}]
  %s6 = inlined_call_operand.vmem [shape: f32[128,16], index: 6, kind: input, shape index: {}]
  %s7 = inlined_call_operand.vmem [shape: f32[16,128], index: 7, kind: input, shape index: {}]
  %s8 = inlined_call_operand.hbm [shape: f32[512,128], index: 8, kind: input, shape index: {}]
  %s9 = inlined_call_operand.vmem [shape: f32[1,32], index: 9, kind: input, shape index: {}]
  %s10 = inlined_call_operand.vmem [shape: f32[1,32], index: 10, kind: input, shape index: {}]
  %s11 = inlined_call_operand.vmem [shape: f32[128,32], index: 11, kind: input, shape index: {}]
  %s12 = inlined_call_operand.vmem [shape: f32[32,128], index: 12, kind: input, shape index: {}]
  %s13 = inlined_call_operand.hbm [shape: f32[512,256], index: 13, kind: input, shape index: {}]
  %s14 = inlined_call_operand.vmem [shape: f32[1,64], index: 14, kind: input, shape index: {}]
  %s15 = inlined_call_operand.vmem [shape: f32[1,64], index: 15, kind: input, shape index: {}]
  %s16 = inlined_call_operand.vmem [shape: f32[256,64], index: 16, kind: input, shape index: {}]
  %s17 = inlined_call_operand.vmem [shape: f32[64,256], index: 17, kind: input, shape index: {}]
  %s18 = inlined_call_operand.hbm [shape: f32[1024,128], index: 18, kind: input, shape index: {}]
  %s19 = inlined_call_operand.vmem [shape: f32[1,128], index: 19, kind: input, shape index: {}]
  %s20 = inlined_call_operand.hbm [shape: f32[4,128], index: 20, kind: output, shape index: {}]
  %s21 = sld [smem:[#allocation0]]
  $region106: #{_lambda_.1} parent=0
    _
  %s23 = ssub.s32 1, %s21
  %s24 = scalar_select 0, %s23, %s21
  $region1: #{_lambda_.1} parent=0
    #allocation4 [shape = 'u8[262144]{0}', space=vmem, size = 0x40000, scoped, tag = 'input window, operand 3, single buffered']
    #allocation5 [shape = 's32[1]{0}', space=sflag, size = 0x4, scoped, tag = 'scoped memory for _lambda_.1']
    #allocation6 [shape = 's32[1]{0}', space=sflag, size = 0x4, scoped, tag = 'scoped memory for _lambda_.1']
    #allocation7 [shape = 'u8[262144]{0}', space=vmem, size = 0x40000, scoped, tag = 'input window, operand 8, single buffered']
    #allocation8 [shape = 's32[1]{0}', space=sflag, size = 0x4, scoped, tag = 'scoped memory for _lambda_.1']
    #allocation9 [shape = 'u8[524288]{0}', space=vmem, size = 0x80000, scoped, tag = 'input window, operand 13, single buffered']
    #allocation10 [shape = 'u8[524288]{0}', space=vmem, size = 0x80000, scoped, tag = 'input window, operand 18, single buffered']
    #allocation11 [shape = 's32[1]{0}', space=sflag, size = 0x4, scoped, tag = 'scoped memory for _lambda_.1']
    #allocation12 [shape = 'u8[2048]{0}', space=vmem, size = 0x800, scoped, tag = 'output window, operand 0, single buffered']
    %25 = vsyncpa [#allocation5], 0
    %26 = vsyncpa [#allocation8], 0
    %27 = vsyncpa [#allocation11], 0
    %28 = vsyncpa [#allocation6], 0
    // Predicated region
    $region2: #{_lambda_.1} parent=1 // pred_check
      _
    $region3: #{_lambda_.1} parent=1 // pred_check_branch
      %30 = sbr.rel (0) target = $region5
    $region4: #{_lambda_.1} parent=1 // pred_region
      _
    $region5: #{_lambda_.1} parent=1 // pred_fallthru
      _
    // Predicated region
    $region6: #{_lambda_.1} parent=1 // pred_check
      _
    $region7: #{_lambda_.1} parent=1 // pred_check_branch
      %32 = sbr.rel (0) target = $region9
    $region8: #{_lambda_.1} parent=1 // pred_region
      _
    $region9: #{_lambda_.1} parent=1 // pred_fallthru
      _
    // Predicated region
    $region10: #{_lambda_.1} parent=1 // pred_check
      _
    $region11: #{_lambda_.1} parent=1 // pred_check_branch
      %34 = sbr.rel (0) target = $region13
    $region12: #{_lambda_.1} parent=1 // pred_region
      _
    $region13: #{_lambda_.1} parent=1 // pred_fallthru
      _
    // Predicated region
    $region14: #{_lambda_.1} parent=1 // pred_check
      _
    $region15: #{_lambda_.1} parent=1 // pred_check_branch
      %36 = sbr.rel (0) target = $region17
    $region16: #{_lambda_.1} parent=1 // pred_region
      %38 = vsyncadd [#allocation5], 0
      %s39 = sshll.u32 %s3, 4
      %s40 = int_to_ptr.hbm [resolvable:$true] %s39
      %s41 = sshll.u32 [#allocation4], 4
      %s42 = int_to_ptr.vmem [resolvable:$true] %s41
      %47 = dma.hbm_to_vmem [thread:$0]  %s40, 8192, %s42, [#allocation5], 128, 128, 8
    $region17: #{_lambda_.1} parent=1 // pred_fallthru
      _
    // Predicated region
    $region18: #{_lambda_.1} parent=1 // pred_check
      _
    $region19: #{_lambda_.1} parent=1 // pred_check_branch
      %49 = sbr.rel (0) target = $region21
    $region20: #{_lambda_.1} parent=1 // pred_region
      _
    $region21: #{_lambda_.1} parent=1 // pred_fallthru
      _
    // Predicated region
    $region22: #{_lambda_.1} parent=1 // pred_check
      _
    $region23: #{_lambda_.1} parent=1 // pred_check_branch
      %51 = sbr.rel (0) target = $region25
    $region24: #{_lambda_.1} parent=1 // pred_region
      _
    $region25: #{_lambda_.1} parent=1 // pred_fallthru
      _
    // Predicated region
    $region26: #{_lambda_.1} parent=1 // pred_check
      _
    $region27: #{_lambda_.1} parent=1 // pred_check_branch
      %53 = sbr.rel (0) target = $region29
    $region28: #{_lambda_.1} parent=1 // pred_region
      _
    $region29: #{_lambda_.1} parent=1 // pred_fallthru
      _
    // Predicated region
    $region30: #{_lambda_.1} parent=1 // pred_check
      _
    $region31: #{_lambda_.1} parent=1 // pred_check_branch
      %55 = sbr.rel (0) target = $region33
    $region32: #{_lambda_.1} parent=1 // pred_region
      _
    $region33: #{_lambda_.1} parent=1 // pred_fallthru
      _
    // Predicated region
    $region34: #{_lambda_.1} parent=1 // pred_check
      _
    $region35: #{_lambda_.1} parent=1 // pred_check_branch
      %57 = sbr.rel (0) target = $region37
    $region36: #{_lambda_.1} parent=1 // pred_region
      %59 = vsyncadd [#allocation8], 0
      %s60 = sshll.u32 %s8, 4
      %s61 = int_to_ptr.hbm [resolvable:$true] %s60
      %s62 = sshll.u32 [#allocation7], 4
      %s63 = int_to_ptr.vmem [resolvable:$true] %s62
      %68 = dma.hbm_to_vmem [thread:$0]  %s61, 8192, %s63, [#allocation8], 128, 128, 8
    $region37: #{_lambda_.1} parent=1 // pred_fallthru
      _
    // Predicated region
    $region38: #{_lambda_.1} parent=1 // pred_check
      _
    $region39: #{_lambda_.1} parent=1 // pred_check_branch
      %70 = sbr.rel (0) target = $region41
    $region40: #{_lambda_.1} parent=1 // pred_region
      _
    $region41: #{_lambda_.1} parent=1 // pred_fallthru
      _
    // Predicated region
    $region42: #{_lambda_.1} parent=1 // pred_check
      _
    $region43: #{_lambda_.1} parent=1 // pred_check_branch
      %72 = sbr.rel (0) target = $region45
    $region44: #{_lambda_.1} parent=1 // pred_region
      _
    $region45: #{_lambda_.1} parent=1 // pred_fallthru
      _
    // Predicated region
    $region46: #{_lambda_.1} parent=1 // pred_check
      _
    $region47: #{_lambda_.1} parent=1 // pred_check_branch
      %74 = sbr.rel (0) target = $region49
    $region48: #{_lambda_.1} parent=1 // pred_region
      _
    $region49: #{_lambda_.1} parent=1 // pred_fallthru
      _
    // Predicated region
    $region50: #{_lambda_.1} parent=1 // pred_check
      _
    $region51: #{_lambda_.1} parent=1 // pred_check_branch
      %76 = sbr.rel (0) target = $region53
    $region52: #{_lambda_.1} parent=1 // pred_region
      _
    $region53: #{_lambda_.1} parent=1 // pred_fallthru
      _
    // Predicated region
    $region54: #{_lambda_.1} parent=1 // pred_check
      _
    $region55: #{_lambda_.1} parent=1 // pred_check_branch
      %78 = sbr.rel (0) target = $region57
    $region56: #{_lambda_.1} parent=1 // pred_region
      %80 = vsyncadd [#allocation8], 0
      %s81 = sshll.u32 %s13, 4
      %s82 = int_to_ptr.hbm [resolvable:$true] %s81
      %s83 = sshll.u32 [#allocation9], 4
      %s84 = int_to_ptr.vmem [resolvable:$true] %s83
      %89 = dma.hbm_to_vmem [thread:$0]  %s82, 16384, %s84, [#allocation8], 256, 256, 16
    $region57: #{_lambda_.1} parent=1 // pred_fallthru
      _
    // Predicated region
    $region58: #{_lambda_.1} parent=1 // pred_check
      _
    $region59: #{_lambda_.1} parent=1 // pred_check_branch
      %91 = sbr.rel (0) target = $region61
    $region60: #{_lambda_.1} parent=1 // pred_region
      _
    $region61: #{_lambda_.1} parent=1 // pred_fallthru
      _
    // Predicated region
    $region62: #{_lambda_.1} parent=1 // pred_check
      _
    $region63: #{_lambda_.1} parent=1 // pred_check_branch
      %93 = sbr.rel (0) target = $region65
    $region64: #{_lambda_.1} parent=1 // pred_region
      _
    $region65: #{_lambda_.1} parent=1 // pred_fallthru
      _
    // Predicated region
    $region66: #{_lambda_.1} parent=1 // pred_check
      _
    $region67: #{_lambda_.1} parent=1 // pred_check_branch
      %95 = sbr.rel (0) target = $region69
    $region68: #{_lambda_.1} parent=1 // pred_region
      _
    $region69: #{_lambda_.1} parent=1 // pred_fallthru
      _
    // Predicated region
    $region70: #{_lambda_.1} parent=1 // pred_check
      _
    $region71: #{_lambda_.1} parent=1 // pred_check_branch
      %97 = sbr.rel (0) target = $region73
    $region72: #{_lambda_.1} parent=1 // pred_region
      _
    $region73: #{_lambda_.1} parent=1 // pred_fallthru
      _
    // Predicated region
    $region74: #{_lambda_.1} parent=1 // pred_check
      _
    $region75: #{_lambda_.1} parent=1 // pred_check_branch
      %99 = sbr.rel (0) target = $region77
    $region76: #{_lambda_.1} parent=1 // pred_region
      %101 = vsyncadd [#allocation11], 0
      %s102 = sshll.u32 %s18, 4
      %s103 = int_to_ptr.hbm [resolvable:$true] %s102
      %s104 = sshll.u32 [#allocation10], 4
      %s105 = int_to_ptr.vmem [resolvable:$true] %s104
      %110 = dma.hbm_to_vmem [thread:$0]  %s103, 16384, %s105, [#allocation11], 128, 128, 8
    $region77: #{_lambda_.1} parent=1 // pred_fallthru
      _
    // Predicated region
    $region78: #{_lambda_.1} parent=1 // pred_check
      _
    $region79: #{_lambda_.1} parent=1 // pred_check_branch
      %112 = sbr.rel (0) target = $region81
    $region80: #{_lambda_.1} parent=1 // pred_region
      _
    $region81: #{_lambda_.1} parent=1 // pred_fallthru
      _
    // Predicated region
    $region82: #{_lambda_.1} parent=1 // pred_check
      _
    $region83: #{_lambda_.1} parent=1 // pred_check_branch
      %114 = sbr.rel (0) target = $region85
    $region84: #{_lambda_.1} parent=1 // pred_region
      %116 = dma.done [#allocation5], 8192
    $region85: #{_lambda_.1} parent=1 // pred_fallthru
      _
    // Predicated region
    $region86: #{_lambda_.1} parent=1 // pred_check
      _
    $region87: #{_lambda_.1} parent=1 // pred_check_branch
      %118 = sbr.rel (0) target = $region89
    $region88: #{_lambda_.1} parent=1 // pred_region
      %120 = dma.done [#allocation8], 8192
    $region89: #{_lambda_.1} parent=1 // pred_fallthru
      _
    // Predicated region
    $region90: #{_lambda_.1} parent=1 // pred_check
      _
    $region91: #{_lambda_.1} parent=1 // pred_check_branch
      %122 = sbr.rel (0) target = $region93
    $region92: #{_lambda_.1} parent=1 // pred_region
      %124 = dma.done [#allocation8], 16384
    $region93: #{_lambda_.1} parent=1 // pred_fallthru
      _
    // Predicated region
    $region94: #{_lambda_.1} parent=1 // pred_check
      _
    $region95: #{_lambda_.1} parent=1 // pred_check_branch
      %126 = sbr.rel (0) target = $region97
    $region96: #{_lambda_.1} parent=1 // pred_region
      %128 = dma.done [#allocation11], 16384
    $region97: #{_lambda_.1} parent=1 // pred_fallthru
      _
    %s129 = scalar_lea.vmem %s0, 1
    %v130 = vld [vmem:[%s129] ss:$2 sm:$0xff]
    %s131 = scalar_lea.vmem %s0, 17
    %v132 = vld [vmem:[%s131] ss:$2 sm:$0x7f]
    %s133 = scalar_lea.vmem %s0, 33
    %v134 = vld [vmem:[%s133] ss:$2 sm:$0xff]
    %s135 = scalar_lea.vmem %s0, 49
    %v136 = vld [vmem:[%s135] ss:$2 sm:$0x7f]
    %vm139 = vcmask 1040384
    %v140 = vrot.slane %v130, 7
    %v141 = vrot.slane %v132, 7
    %v142 = vsel %vm139, %v140, %v141
    %v147 = vrot.slane %v134, 7
    %v148 = vrot.slane %v136, 7
    %v149 = vsel %vm139, %v147, %v148
    %v152 = vsel %vm139, 0.0, %v140
    %v153 = vsel %vm139, 0.0, %v147
    %v154 = vld [vmem:[%s0] ss:$2 sm:$0xff]
    %s155 = scalar_lea.vmem %s0, 16
    %v156 = vld [vmem:[%s155] ss:$2 sm:$0xff]
    %s157 = scalar_lea.vmem %s0, 32
    %v158 = vld [vmem:[%s157] ss:$2 sm:$0xff]
    %s159 = scalar_lea.vmem %s0, 48
    %v160 = vld [vmem:[%s159] ss:$2 sm:$0xff]
    %v161 = vld [vmem:[%s131] ss:$2 sm:$0xff]
    %v162 = vld [vmem:[%s135] ss:$2 sm:$0xff]
    %s163 = scalar_lea.vmem %s0, 2
    %v164 = vld [vmem:[%s163] ss:$2 sm:$0xff]
    %s165 = scalar_lea.vmem %s0, 18
    %v166 = vld [vmem:[%s165] ss:$2 sm:$0x7f]
    %s167 = scalar_lea.vmem %s0, 34
    %v168 = vld [vmem:[%s167] ss:$2 sm:$0xff]
    %s169 = scalar_lea.vmem %s0, 50
    %v170 = vld [vmem:[%s169] ss:$2 sm:$0x7f]
    %vm171 = vcmask 1046528
    %v172 = vsel %vm171, %v166, 0.0
    %v173 = vsel %vm171, %v170, 0.0
    %v174 = vld [vmem:[%s1] sm:$0xff]
    %v175 = vld [vmem:[%s1 + $0x8] sm:$0xff]
    %v176 = vld [vmem:[%s1 + $0x10] sm:$0xff]
    %v177 = vld [vmem:[%s1 + $0x18] sm:$0xff]
    %v178 = vld [vmem:[%s1 + $0x20] sm:$0xff]
    %v179 = vld [vmem:[%s1 + $0x28] sm:$0xff]
    %v180 = vld [vmem:[%s1 + $0x30] sm:$0xff]
    %v181 = vld [vmem:[%s1 + $0x38] sm:$0xff]
    %v182 = vld [vmem:[%s1 + $0x40] sm:$0xff]
    %v183 = vld [vmem:[%s1 + $0x48] sm:$0xff]
    %v184 = vld [vmem:[%s1 + $0x50] sm:$0xff]
    %v185 = vld [vmem:[%s1 + $0x58] sm:$0xff]
    %v186 = vld [vmem:[%s1 + $0x60] sm:$0xff]
    %v187 = vld [vmem:[%s1 + $0x68] sm:$0xff]
    %v188 = vld [vmem:[%s1 + $0x70] sm:$0xff]
    %v189 = vld [vmem:[%s1 + $0x78] sm:$0xff]
    %v190 = vld [vmem:[%s1 + $0x80] sm:$0xff]
    %v191 = vld [vmem:[%s1 + $0x88] sm:$0xff]
    %v192 = vld [vmem:[%s1 + $0x90] sm:$0xff]
    %v193 = vld [vmem:[%s1 + $0x98] sm:$0xff]
    %v194 = vld [vmem:[%s1 + $0xa0] sm:$0xff]
    %v195 = vld [vmem:[%s1 + $0xa8] sm:$0xff]
    %v196 = vld [vmem:[%s1 + $0xb0] sm:$0xff]
    %v197 = vld [vmem:[%s1 + $0xb8] sm:$0xff]
    %v198 = vld [vmem:[%s1 + $0xc0] sm:$0xff]
    %v199 = vld [vmem:[%s1 + $0xc8] sm:$0xff]
    %v200 = vld [vmem:[%s1 + $0xd0] sm:$0xff]
    %v201 = vld [vmem:[%s1 + $0xd8] sm:$0xff]
    %v202 = vld [vmem:[%s1 + $0xe0] sm:$0xff]
    %v203 = vld [vmem:[%s1 + $0xe8] sm:$0xff]
    %v204 = vld [vmem:[%s1 + $0xf0] sm:$0xff]
    %v205 = vld [vmem:[%s1 + $0xf8] sm:$0xff]
    %v206 = vld [vmem:[%s1 + $0x100] sm:$0xff]
    %v207 = vld [vmem:[%s1 + $0x108] sm:$0xff]
    %v208 = vld [vmem:[%s1 + $0x110] sm:$0xff]
    %v209 = vld [vmem:[%s1 + $0x118] sm:$0xff]
    %v210 = vld [vmem:[%s1 + $0x120] sm:$0xff]
    %v211 = vld [vmem:[%s1 + $0x128] sm:$0xff]
    %v212 = vld [vmem:[%s1 + $0x130] sm:$0xff]
    %v213 = vld [vmem:[%s1 + $0x138] sm:$0xff]
    %v214 = vld [vmem:[%s1 + $0x140] sm:$0xff]
    %v215 = vld [vmem:[%s1 + $0x148] sm:$0xff]
    %v216 = vld [vmem:[%s1 + $0x150] sm:$0xff]
    %v217 = vld [vmem:[%s1 + $0x158] sm:$0xff]
    %v218 = vld [vmem:[%s1 + $0x160] sm:$0xff]
    %v219 = vld [vmem:[%s1 + $0x168] sm:$0xff]
    %v220 = vld [vmem:[%s1 + $0x170] sm:$0xff]
    %v221 = vld [vmem:[%s1 + $0x178] sm:$0xff]
    %v222 = vld [vmem:[%s1 + $0x180] sm:$0xff]
    %v223 = vld [vmem:[%s1 + $0x188] sm:$0xff]
    %v224 = vld [vmem:[%s1 + $0x190] sm:$0xff]
    %v225 = vld [vmem:[%s1 + $0x198] sm:$0xff]
    %v226 = vld [vmem:[%s1 + $0x1a0] sm:$0xff]
    %v227 = vld [vmem:[%s1 + $0x1a8] sm:$0xff]
    %v228 = vld [vmem:[%s1 + $0x1b0] sm:$0xff]
    %v229 = vld [vmem:[%s1 + $0x1b8] sm:$0xff]
    %v230 = vld [vmem:[%s1 + $0x1c0] sm:$0xff]
    %v231 = vld [vmem:[%s1 + $0x1c8] sm:$0xff]
    %v232 = vld [vmem:[%s1 + $0x1d0] sm:$0xff]
    %v233 = vld [vmem:[%s1 + $0x1d8] sm:$0xff]
    %v234 = vld [vmem:[%s1 + $0x1e0] sm:$0xff]
    %v235 = vld [vmem:[%s1 + $0x1e8] sm:$0xff]
    %v236 = vld [vmem:[%s1 + $0x1f0] sm:$0xff]
    %v237 = vld [vmem:[%s1 + $0x1f8] sm:$0xff]
    %v238 = vld [vmem:[%s2] sm:$0x1]
    %v240 = vperm.slane %v238, 0
    %242 = vmatpush.msra.mxu0 %v189
    %243 = vmatpush.msra.mxu0 %v188
    %244 = vmatpush.msra.mxu0 %v187
    %245 = vmatpush.msra.mxu0 %v186
    %246 = vmatpush.msra.mxu0 %v185
    %247 = vmatpush.msra.mxu0 %v184
    %248 = vmatpush.msra.mxu0 %v183
    %249 = vmatpush.msra.mxu0 %v182
    %250 = vmatpush.msra.mxu0 %v181
    %251 = vmatpush.msra.mxu0 %v180
    %252 = vmatpush.msra.mxu0 %v179
    %253 = vmatpush.msra.mxu0 %v178
    %254 = vmatpush.msra.mxu0 %v177
    %255 = vmatpush.msra.mxu0 %v176
    %256 = vmatpush.msra.mxu0 %v175
    %257 = vmatpush.msra.mxu0 %v174
    %258 = vmatmul.f32.gmra.mxu0 %v152
    %v259 = vpop.f32.mrf.mxu0
    %v260 = vadd.f32 %v240, %v259
    %261 = vmatmul.f32.gmra.mxu0 %v142
    %v262 = vpop.f32.mrf.mxu0
    %v263 = vadd.f32 %v240, %v262
    %264 = vmatmul.f32.gmra.mxu0 %v153
    %v265 = vpop.f32.mrf.mxu0
    %v266 = vadd.f32 %v240, %v265
    %267 = vmatmul.f32.gmra.mxu0 %v149
    %v268 = vpop.f32.mrf.mxu0
    %v269 = vadd.f32 %v240, %v268
    %270 = vdwg.mxu0
    %271 = vmatpush.msra.mxu0 %v205
    %272 = vmatpush.msra.mxu0 %v204
    %273 = vmatpush.msra.mxu0 %v203
    %274 = vmatpush.msra.mxu0 %v202
    %275 = vmatpush.msra.mxu0 %v201
    %276 = vmatpush.msra.mxu0 %v200
    %277 = vmatpush.msra.mxu0 %v199
    %278 = vmatpush.msra.mxu0 %v198
    %279 = vmatpush.msra.mxu0 %v197
    %280 = vmatpush.msra.mxu0 %v196
    %281 = vmatpush.msra.mxu0 %v195
    %282 = vmatpush.msra.mxu0 %v194
    %283 = vmatpush.msra.mxu0 %v193
    %284 = vmatpush.msra.mxu0 %v192
    %285 = vmatpush.msra.mxu0 %v191
    %286 = vmatpush.msra.mxu0 %v190
    %287 = vmatmul.f32.gmra.mxu0 %v154
    %v288 = vpop.f32.mrf.mxu0
    %v289 = vadd.f32 %v260, %v288
    %290 = vmatmul.f32.gmra.mxu0 %v156
    %v291 = vpop.f32.mrf.mxu0
    %v292 = vadd.f32 %v263, %v291
    %293 = vmatmul.f32.gmra.mxu0 %v158
    %v294 = vpop.f32.mrf.mxu0
    %v295 = vadd.f32 %v266, %v294
    %296 = vmatmul.f32.gmra.mxu0 %v160
    %v297 = vpop.f32.mrf.mxu0
    %v298 = vadd.f32 %v269, %v297
    %299 = vdwg.mxu0
    %300 = vmatpush.msra.mxu0 %v221
    %301 = vmatpush.msra.mxu0 %v220
    %302 = vmatpush.msra.mxu0 %v219
    %303 = vmatpush.msra.mxu0 %v218
    %304 = vmatpush.msra.mxu0 %v217
    %305 = vmatpush.msra.mxu0 %v216
    %306 = vmatpush.msra.mxu0 %v215
    %307 = vmatpush.msra.mxu0 %v214
    %308 = vmatpush.msra.mxu0 %v213
    %309 = vmatpush.msra.mxu0 %v212
    %310 = vmatpush.msra.mxu0 %v211
    %311 = vmatpush.msra.mxu0 %v210
    %312 = vmatpush.msra.mxu0 %v209
    %313 = vmatpush.msra.mxu0 %v208
    %314 = vmatpush.msra.mxu0 %v207
    %315 = vmatpush.msra.mxu0 %v206
    %316 = vmatmul.f32.gmra.mxu0 %v130
    %v317 = vpop.f32.mrf.mxu0
    %v318 = vadd.f32 %v289, %v317
    %319 = vmatmul.f32.gmra.mxu0 %v161
    %v320 = vpop.f32.mrf.mxu0
    %v321 = vadd.f32 %v292, %v320
    %322 = vmatmul.f32.gmra.mxu0 %v134
    %v323 = vpop.f32.mrf.mxu0
    %v324 = vadd.f32 %v295, %v323
    %325 = vmatmul.f32.gmra.mxu0 %v162
    %v326 = vpop.f32.mrf.mxu0
    %v327 = vadd.f32 %v298, %v326
    %328 = vdwg.mxu0
    %329 = vmatpush.msra.mxu0 %v237
    %330 = vmatpush.msra.mxu0 %v236
    %331 = vmatpush.msra.mxu0 %v235
    %332 = vmatpush.msra.mxu0 %v234
    %333 = vmatpush.msra.mxu0 %v233
    %334 = vmatpush.msra.mxu0 %v232
    %335 = vmatpush.msra.mxu0 %v231
    %336 = vmatpush.msra.mxu0 %v230
    %337 = vmatpush.msra.mxu0 %v229
    %338 = vmatpush.msra.mxu0 %v228
    %339 = vmatpush.msra.mxu0 %v227
    %340 = vmatpush.msra.mxu0 %v226
    %341 = vmatpush.msra.mxu0 %v225
    %342 = vmatpush.msra.mxu0 %v224
    %343 = vmatpush.msra.mxu0 %v223
    %344 = vmatpush.msra.mxu0 %v222
    %345 = vmatmul.f32.gmra.mxu0 %v164
    %v346 = vpop.f32.mrf.mxu0
    %v347 = vadd.f32 %v318, %v346
    %348 = vmatmul.f32.gmra.mxu0 %v172
    %v349 = vpop.f32.mrf.mxu0
    %v350 = vadd.f32 %v321, %v349
    %351 = vmatmul.f32.gmra.mxu0 %v168
    %v352 = vpop.f32.mrf.mxu0
    %v353 = vadd.f32 %v324, %v352
    %354 = vmatmul.f32.gmra.mxu0 %v173
    %v355 = vpop.f32.mrf.mxu0
    %v356 = vadd.f32 %v327, %v355
    %357 = vdwg.mxu0
    %vm358 = vcmp.ge.f32.partialorder %v347, 0.0
    %vm359 = vcmp.ge.f32.partialorder %v350, 0.0
    %vm360 = vcmp.ge.f32.partialorder %v353, 0.0
    %vm361 = vcmp.ge.f32.partialorder %v356, 0.0
    %v362 = vmul.f32 %v347, 0.2
    %v363 = vmul.f32 %v350, 0.2
    %v364 = vmul.f32 %v353, 0.2
    %v365 = vmul.f32 %v356, 0.2
    %v366 = vsel %vm358, %v347, %v362
    %v367 = vsel %vm359, %v350, %v363
    %v368 = vsel %vm360, %v353, %v364
    %v369 = vsel %vm361, %v356, %v365
    %370 = vst [vmem:[#allocation2] sm:$0xff] %v366
    %371 = vst [vmem:[#allocation2 + $0x8] sm:$0xff] %v367
    %372 = vst [vmem:[#allocation2 + $0x10] sm:$0xff] %v368
    %373 = vst [vmem:[#allocation2 + $0x18] sm:$0xff] %v369
    %s374 = scalar_lea.vmem [#allocation2], 1
    %v375 = vld [vmem:[%s374] ss:$2 sm:$0x7f]
    %s376 = scalar_lea.vmem [#allocation2], 17
    %v377 = vld [vmem:[%s376] ss:$2 sm:$0x7f]
    %v379 = vrot.slane %v375, 7
    %v382 = vrot.slane %v377, 7
    %v384 = vsel %vm139, 0.0, %v379
    %v385 = vsel %vm139, 0.0, %v382
    %v386 = vld [vmem:[#allocation2] ss:$2 sm:$0xff]
    %s387 = scalar_lea.vmem [#allocation2], 16
    %v388 = vld [vmem:[%s387] ss:$2 sm:$0xff]
    %v389 = vld [vmem:[%s374] ss:$2 sm:$0xff]
    %v390 = vld [vmem:[%s376] ss:$2 sm:$0xff]
    %s391 = scalar_lea.vmem [#allocation2], 2
    %v392 = vld [vmem:[%s391] ss:$2 sm:$0x7f]
    %s393 = scalar_lea.vmem [#allocation2], 18
    %v394 = vld [vmem:[%s393] ss:$2 sm:$0x7f]
    %v395 = vsel %vm171, %v392, 0.0
    %v396 = vsel %vm171, %v394, 0.0
    %v397 = vld [vmem:[#allocation4] sm:$0xff]
    %v398 = vld [vmem:[#allocation4 + $0x8] sm:$0xff]
    %v399 = vld [vmem:[#allocation4 + $0x10] sm:$0xff]
    %v400 = vld [vmem:[#allocation4 + $0x18] sm:$0xff]
    %v401 = vld [vmem:[#allocation4 + $0x20] sm:$0xff]
    %v402 = vld [vmem:[#allocation4 + $0x28] sm:$0xff]
    %v403 = vld [vmem:[#allocation4 + $0x30] sm:$0xff]
    %v404 = vld [vmem:[#allocation4 + $0x38] sm:$0xff]
    %v405 = vld [vmem:[#allocation4 + $0x40] sm:$0xff]
    %v406 = vld [vmem:[#allocation4 + $0x48] sm:$0xff]
    %v407 = vld [vmem:[#allocation4 + $0x50] sm:$0xff]
    %v408 = vld [vmem:[#allocation4 + $0x58] sm:$0xff]
    %v409 = vld [vmem:[#allocation4 + $0x60] sm:$0xff]
    %v410 = vld [vmem:[#allocation4 + $0x68] sm:$0xff]
    %v411 = vld [vmem:[#allocation4 + $0x70] sm:$0xff]
    %v412 = vld [vmem:[#allocation4 + $0x78] sm:$0xff]
    %v413 = vld [vmem:[#allocation4 + $0x80] sm:$0xff]
    %v414 = vld [vmem:[#allocation4 + $0x88] sm:$0xff]
    %v415 = vld [vmem:[#allocation4 + $0x90] sm:$0xff]
    %v416 = vld [vmem:[#allocation4 + $0x98] sm:$0xff]
    %v417 = vld [vmem:[#allocation4 + $0xa0] sm:$0xff]
    %v418 = vld [vmem:[#allocation4 + $0xa8] sm:$0xff]
    %v419 = vld [vmem:[#allocation4 + $0xb0] sm:$0xff]
    %v420 = vld [vmem:[#allocation4 + $0xb8] sm:$0xff]
    %v421 = vld [vmem:[#allocation4 + $0xc0] sm:$0xff]
    %v422 = vld [vmem:[#allocation4 + $0xc8] sm:$0xff]
    %v423 = vld [vmem:[#allocation4 + $0xd0] sm:$0xff]
    %v424 = vld [vmem:[#allocation4 + $0xd8] sm:$0xff]
    %v425 = vld [vmem:[#allocation4 + $0xe0] sm:$0xff]
    %v426 = vld [vmem:[#allocation4 + $0xe8] sm:$0xff]
    %v427 = vld [vmem:[#allocation4 + $0xf0] sm:$0xff]
    %v428 = vld [vmem:[#allocation4 + $0xf8] sm:$0xff]
    %v429 = vld [vmem:[#allocation4 + $0x100] sm:$0xff]
    %v430 = vld [vmem:[#allocation4 + $0x108] sm:$0xff]
    %v431 = vld [vmem:[#allocation4 + $0x110] sm:$0xff]
    %v432 = vld [vmem:[#allocation4 + $0x118] sm:$0xff]
    %v433 = vld [vmem:[#allocation4 + $0x120] sm:$0xff]
    %v434 = vld [vmem:[#allocation4 + $0x128] sm:$0xff]
    %v435 = vld [vmem:[#allocation4 + $0x130] sm:$0xff]
    %v436 = vld [vmem:[#allocation4 + $0x138] sm:$0xff]
    %v437 = vld [vmem:[#allocation4 + $0x140] sm:$0xff]
    %v438 = vld [vmem:[#allocation4 + $0x148] sm:$0xff]
    %v439 = vld [vmem:[#allocation4 + $0x150] sm:$0xff]
    %v440 = vld [vmem:[#allocation4 + $0x158] sm:$0xff]
    %v441 = vld [vmem:[#allocation4 + $0x160] sm:$0xff]
    %v442 = vld [vmem:[#allocation4 + $0x168] sm:$0xff]
    %v443 = vld [vmem:[#allocation4 + $0x170] sm:$0xff]
    %v444 = vld [vmem:[#allocation4 + $0x178] sm:$0xff]
    %v445 = vld [vmem:[#allocation4 + $0x180] sm:$0xff]
    %v446 = vld [vmem:[#allocation4 + $0x188] sm:$0xff]
    %v447 = vld [vmem:[#allocation4 + $0x190] sm:$0xff]
    %v448 = vld [vmem:[#allocation4 + $0x198] sm:$0xff]
    %v449 = vld [vmem:[#allocation4 + $0x1a0] sm:$0xff]
    %v450 = vld [vmem:[#allocation4 + $0x1a8] sm:$0xff]
    %v451 = vld [vmem:[#allocation4 + $0x1b0] sm:$0xff]
    %v452 = vld [vmem:[#allocation4 + $0x1b8] sm:$0xff]
    %v453 = vld [vmem:[#allocation4 + $0x1c0] sm:$0xff]
    %v454 = vld [vmem:[#allocation4 + $0x1c8] sm:$0xff]
    %v455 = vld [vmem:[#allocation4 + $0x1d0] sm:$0xff]
    %v456 = vld [vmem:[#allocation4 + $0x1d8] sm:$0xff]
    %v457 = vld [vmem:[#allocation4 + $0x1e0] sm:$0xff]
    %v458 = vld [vmem:[#allocation4 + $0x1e8] sm:$0xff]
    %v459 = vld [vmem:[#allocation4 + $0x1f0] sm:$0xff]
    %v460 = vld [vmem:[#allocation4 + $0x1f8] sm:$0xff]
    %461 = vmatpush.msra.mxu0 %v412
    %462 = vmatpush.msra.mxu0 %v411
    %463 = vmatpush.msra.mxu0 %v410
    %464 = vmatpush.msra.mxu0 %v409
    %465 = vmatpush.msra.mxu0 %v408
    %466 = vmatpush.msra.mxu0 %v407
    %467 = vmatpush.msra.mxu0 %v406
    %468 = vmatpush.msra.mxu0 %v405
    %469 = vmatpush.msra.mxu0 %v404
    %470 = vmatpush.msra.mxu0 %v403
    %471 = vmatpush.msra.mxu0 %v402
    %472 = vmatpush.msra.mxu0 %v401
    %473 = vmatpush.msra.mxu0 %v400
    %474 = vmatpush.msra.mxu0 %v399
    %475 = vmatpush.msra.mxu0 %v398
    %476 = vmatpush.msra.mxu0 %v397
    %477 = vmatmul.f32.gmra.mxu0 %v384
    %v478 = vpop.f32.mrf.mxu0
    %v479 = vadd.f32 0.0, %v478
    %480 = vmatmul.f32.gmra.mxu0 %v385
    %v481 = vpop.f32.mrf.mxu0
    %v482 = vadd.f32 0.0, %v481
    %483 = vdwg.mxu0
    %484 = vmatpush.msra.mxu0 %v428
    %485 = vmatpush.msra.mxu0 %v427
    %486 = vmatpush.msra.mxu0 %v426
    %487 = vmatpush.msra.mxu0 %v425
    %488 = vmatpush.msra.mxu0 %v424
    %489 = vmatpush.msra.mxu0 %v423
    %490 = vmatpush.msra.mxu0 %v422
    %491 = vmatpush.msra.mxu0 %v421
    %492 = vmatpush.msra.mxu0 %v420
    %493 = vmatpush.msra.mxu0 %v419
    %494 = vmatpush.msra.mxu0 %v418
    %495 = vmatpush.msra.mxu0 %v417
    %496 = vmatpush.msra.mxu0 %v416
    %497 = vmatpush.msra.mxu0 %v415
    %498 = vmatpush.msra.mxu0 %v414
    %499 = vmatpush.msra.mxu0 %v413
    %500 = vmatmul.f32.gmra.mxu0 %v386
    %v501 = vpop.f32.mrf.mxu0
    %v502 = vadd.f32 %v479, %v501
    %503 = vmatmul.f32.gmra.mxu0 %v388
    %v504 = vpop.f32.mrf.mxu0
    %v505 = vadd.f32 %v482, %v504
    %506 = vdwg.mxu0
    %507 = vmatpush.msra.mxu0 %v444
    %508 = vmatpush.msra.mxu0 %v443
    %509 = vmatpush.msra.mxu0 %v442
    %510 = vmatpush.msra.mxu0 %v441
    %511 = vmatpush.msra.mxu0 %v440
    %512 = vmatpush.msra.mxu0 %v439
    %513 = vmatpush.msra.mxu0 %v438
    %514 = vmatpush.msra.mxu0 %v437
    %515 = vmatpush.msra.mxu0 %v436
    %516 = vmatpush.msra.mxu0 %v435
    %517 = vmatpush.msra.mxu0 %v434
    %518 = vmatpush.msra.mxu0 %v433
    %519 = vmatpush.msra.mxu0 %v432
    %520 = vmatpush.msra.mxu0 %v431
    %521 = vmatpush.msra.mxu0 %v430
    %522 = vmatpush.msra.mxu0 %v429
    %523 = vmatmul.f32.gmra.mxu0 %v389
    %v524 = vpop.f32.mrf.mxu0
    %v525 = vadd.f32 %v502, %v524
    %526 = vmatmul.f32.gmra.mxu0 %v390
    %v527 = vpop.f32.mrf.mxu0
    %v528 = vadd.f32 %v505, %v527
    %529 = vdwg.mxu0
    %530 = vmatpush.msra.mxu0 %v460
    %531 = vmatpush.msra.mxu0 %v459
    %532 = vmatpush.msra.mxu0 %v458
    %533 = vmatpush.msra.mxu0 %v457
    %534 = vmatpush.msra.mxu0 %v456
    %535 = vmatpush.msra.mxu0 %v455
    %536 = vmatpush.msra.mxu0 %v454
    %537 = vmatpush.msra.mxu0 %v453
    %538 = vmatpush.msra.mxu0 %v452
    %539 = vmatpush.msra.mxu0 %v451
    %540 = vmatpush.msra.mxu0 %v450
    %541 = vmatpush.msra.mxu0 %v449
    %542 = vmatpush.msra.mxu0 %v448
    %543 = vmatpush.msra.mxu0 %v447
    %544 = vmatpush.msra.mxu0 %v446
    %545 = vmatpush.msra.mxu0 %v445
    %546 = vmatmul.f32.gmra.mxu0 %v395
    %v547 = vpop.f32.mrf.mxu0
    %v548 = vadd.f32 %v525, %v547
    %549 = vmatmul.f32.gmra.mxu0 %v396
    %v550 = vpop.f32.mrf.mxu0
    %v551 = vadd.f32 %v528, %v550
    %552 = vdwg.mxu0
    %v553 = vld [vmem:[%s4] sm:$0x1]
    %v554 = vld [vmem:[%s5] sm:$0x1]
    %v555 = vld [vmem:[%s6] sm:$0xff]
    %v556 = vld [vmem:[%s6 + $0x8] sm:$0xff]
    %v557 = vld [vmem:[%s6 + $0x10] sm:$0xff]
    %v558 = vld [vmem:[%s6 + $0x18] sm:$0xff]
    %v559 = vld [vmem:[%s6 + $0x20] sm:$0xff]
    %v560 = vld [vmem:[%s6 + $0x28] sm:$0xff]
    %v561 = vld [vmem:[%s6 + $0x30] sm:$0xff]
    %v562 = vld [vmem:[%s6 + $0x38] sm:$0xff]
    %v563 = vld [vmem:[%s6 + $0x40] sm:$0xff]
    %v564 = vld [vmem:[%s6 + $0x48] sm:$0xff]
    %v565 = vld [vmem:[%s6 + $0x50] sm:$0xff]
    %v566 = vld [vmem:[%s6 + $0x58] sm:$0xff]
    %v567 = vld [vmem:[%s6 + $0x60] sm:$0xff]
    %v568 = vld [vmem:[%s6 + $0x68] sm:$0xff]
    %v569 = vld [vmem:[%s6 + $0x70] sm:$0xff]
    %v570 = vld [vmem:[%s6 + $0x78] sm:$0xff]
    %v571 = vld [vmem:[%s7] sm:$0xff]
    %v572 = vld [vmem:[%s7 + $0x8] sm:$0xff]
    %v573 = vadd.f32 %v548, %v551
    %v574 = vrot.slane %v573, 4
    %v575 = vadd.f32 %v573, %v574
    %v576 = vrot.slane %v575, 2
    %v577 = vadd.f32 %v575, %v576
    %v578 = vrot.slane %v577, 1
    %v579 = vadd.f32 %v577, %v578
    %v580 = vmul.f32 %v548, %v548
    %v581 = vmul.f32 %v551, %v551
    %v582 = vadd.f32 %v580, %v581
    %v583 = vrot.slane %v582, 4
    %v584 = vadd.f32 %v582, %v583
    %v585 = vrot.slane %v584, 2
    %v586 = vadd.f32 %v584, %v585
    %v587 = vrot.slane %v586, 1
    %v588 = vadd.f32 %v586, %v587
    %v589 = vsel %vm139, %v579, %v588
    %590 = vmatpush.msra.mxu0 %v570
    %591 = vmatpush.msra.mxu0 %v569
    %592 = vmatpush.msra.mxu0 %v568
    %593 = vmatpush.msra.mxu0 %v567
    %594 = vmatpush.msra.mxu0 %v566
    %595 = vmatpush.msra.mxu0 %v565
    %596 = vmatpush.msra.mxu0 %v564
    %597 = vmatpush.msra.mxu0 %v563
    %598 = vmatpush.msra.mxu0 %v562
    %599 = vmatpush.msra.mxu0 %v561
    %600 = vmatpush.msra.mxu0 %v560
    %601 = vmatpush.msra.mxu0 %v559
    %602 = vmatpush.msra.mxu0 %v558
    %603 = vmatpush.msra.mxu0 %v557
    %604 = vmatpush.msra.mxu0 %v556
    %605 = vmatpush.msra.mxu0 %v555
    %606 = vmatmul.f32.gmra.mxu0 %v589
    %v607 = vpop.f32.mrf.mxu0
    %v608 = vadd.f32 0.0, %v607
    %609 = vdwg.mxu0
    %v610 = vmul.f32 %v608, 0.0078125
    %v611 = vmul.f32 %v610, %v610
    %v613 = vrot.slane %v611, 7
    %v615 = vsub.f32 %v610, %v613
    %v616 = vadd.f32 %v615, 1e-05
    %v617 = vrsqrt.pop %v616
    %v618 = vmul.f32 %v617, %v616
    %v619 = vmul.f32 %v618, %v617
    %v620 = vmul.f32 0.5, %v619
    %v621 = vsub.f32 1.5, %v620
    %v622 = vmul.f32 %v617, %v621
    %vm623 = vweird.f32 %v616
    %vm624 = vweird.f32 %v617
    %vm625 = vmor %vm623, %vm624
    %v626 = vsel %vm625, %v617, %v622
    %628 = vst [vmem:[#allocation1] sm:$0xff] %v626
    %s629 = scalar_lea.vmem [#allocation1], 1
    %v630 = vld [vmem:[%s629] ss:$9 sm:$0xff]
    %v632 = vmul.f32 %v553, %v630
    %v633 = vmul.f32 %v610, %v632
    %v634 = vsub.f32 %v554, %v633
    %v636 = vperm.slane %v634, 0
    %v638 = vsel %vm139, %v632, %v636
    %vm639 = vcmask 130048
    %v641 = vsel %vm639, %v638, 0
    %643 = vmatpush.msra.mxu0 0.0
    %644 = vmatpush.msra.mxu0 0.0
    %645 = vmatpush.msra.mxu0 0.0
    %646 = vmatpush.msra.mxu0 0.0
    %647 = vmatpush.msra.mxu0 0.0
    %648 = vmatpush.msra.mxu0 0.0
    %649 = vmatpush.msra.mxu0 0.0
    %650 = vmatpush.msra.mxu0 0.0
    %651 = vmatpush.msra.mxu0 0.0
    %652 = vmatpush.msra.mxu0 0.0
    %653 = vmatpush.msra.mxu0 0.0
    %654 = vmatpush.msra.mxu0 0.0
    %655 = vmatpush.msra.mxu0 0.0
    %656 = vmatpush.msra.mxu0 0.0
    %657 = vmatpush.msra.mxu0 %v572
    %658 = vmatpush.msra.mxu0 %v571
    %659 = vmatmul.f32.gmra.mxu0 %v641
    %v660 = vpop.f32.mrf.mxu0
    %v661 = vadd.f32 0.0, %v660
    %662 = vdwg.mxu0
    %v663 = vperm.slane %v661, 0
    %v664 = vmul.f32 %v548, %v663
    %v665 = vmul.f32 %v551, %v663
    %v666 = vperm.slane %v661, 1
    %v667 = vadd.f32 %v664, %v666
    %v668 = vadd.f32 %v665, %v666
    %vm669 = vcmp.ge.f32.partialorder %v667, 0.0
    %vm670 = vcmp.ge.f32.partialorder %v668, 0.0
    %v671 = vmul.f32 %v667, 0.2
    %v672 = vmul.f32 %v668, 0.2
    %v673 = vsel %vm669, %v667, %v671
    %v674 = vsel %vm670, %v668, %v672
    %675 = vst [vmem:[#allocation3] sm:$0xff] %v673
    %676 = vst [vmem:[#allocation3 + $0x8] sm:$0xff] %v674
    %s677 = scalar_lea.vmem [#allocation3], 1
    %v678 = vld [vmem:[%s677] ss:$2 sm:$0x7]
    %s679 = scalar_lea.vmem [#allocation3], 9
    %v680 = vld [vmem:[%s679] ss:$2 sm:$0x7]
    %v682 = vrot.slane %v678, 7
    %v685 = vrot.slane %v680, 3
    %v687 = vsel %vm139, 0.0, %v682
    %vm688 = vcmask 1043456
    %v689 = vsel %vm688, %v687, 0.0
    %vm690 = vcmask 1044480
    %v691 = vsel %vm690, %v689, %v685
    %v692 = vld [vmem:[#allocation3] ss:$2 sm:$0xf]
    %s693 = scalar_lea.vmem [#allocation3], 8
    %v694 = vld [vmem:[%s693] ss:$2 sm:$0xf]
    %v696 = vrot.slane %v694, 4
    %v698 = vsel %vm688, %v692, %v696
    %v699 = vld [vmem:[%s677] ss:$2 sm:$0xf]
    %v700 = vld [vmem:[%s679] ss:$2 sm:$0xf]
    %v702 = vrot.slane %v700, 4
    %v704 = vsel %vm688, %v699, %v702
    %s705 = scalar_lea.vmem [#allocation3], 2
    %v706 = vld [vmem:[%s705] ss:$2 sm:$0x7]
    %s707 = scalar_lea.vmem [#allocation3], 10
    %v708 = vld [vmem:[%s707] ss:$2 sm:$0x7]
    %v710 = vrot.slane %v708, 4
    %vm712 = vcmask 1042432
    %v713 = vsel %vm712, %v706, 0.0
    %v714 = vsel %vm688, %v713, %v710
    %v715 = vsel %vm171, %v714, 0.0
    %v716 = vld [vmem:[#allocation7] sm:$0xff]
    %v717 = vld [vmem:[#allocation7 + $0x8] sm:$0xff]
    %v718 = vld [vmem:[#allocation7 + $0x10] sm:$0xff]
    %v719 = vld [vmem:[#allocation7 + $0x18] sm:$0xff]
    %v720 = vld [vmem:[#allocation7 + $0x20] sm:$0xff]
    %v721 = vld [vmem:[#allocation7 + $0x28] sm:$0xff]
    %v722 = vld [vmem:[#allocation7 + $0x30] sm:$0xff]
    %v723 = vld [vmem:[#allocation7 + $0x38] sm:$0xff]
    %v724 = vld [vmem:[#allocation7 + $0x40] sm:$0xff]
    %v725 = vld [vmem:[#allocation7 + $0x48] sm:$0xff]
    %v726 = vld [vmem:[#allocation7 + $0x50] sm:$0xff]
    %v727 = vld [vmem:[#allocation7 + $0x58] sm:$0xff]
    %v728 = vld [vmem:[#allocation7 + $0x60] sm:$0xff]
    %v729 = vld [vmem:[#allocation7 + $0x68] sm:$0xff]
    %v730 = vld [vmem:[#allocation7 + $0x70] sm:$0xff]
    %v731 = vld [vmem:[#allocation7 + $0x78] sm:$0xff]
    %v732 = vld [vmem:[#allocation7 + $0x80] sm:$0xff]
    %v733 = vld [vmem:[#allocation7 + $0x88] sm:$0xff]
    %v734 = vld [vmem:[#allocation7 + $0x90] sm:$0xff]
    %v735 = vld [vmem:[#allocation7 + $0x98] sm:$0xff]
    %v736 = vld [vmem:[#allocation7 + $0xa0] sm:$0xff]
    %v737 = vld [vmem:[#allocation7 + $0xa8] sm:$0xff]
    %v738 = vld [vmem:[#allocation7 + $0xb0] sm:$0xff]
    %v739 = vld [vmem:[#allocation7 + $0xb8] sm:$0xff]
    %v740 = vld [vmem:[#allocation7 + $0xc0] sm:$0xff]
    %v741 = vld [vmem:[#allocation7 + $0xc8] sm:$0xff]
    %v742 = vld [vmem:[#allocation7 + $0xd0] sm:$0xff]
    %v743 = vld [vmem:[#allocation7 + $0xd8] sm:$0xff]
    %v744 = vld [vmem:[#allocation7 + $0xe0] sm:$0xff]
    %v745 = vld [vmem:[#allocation7 + $0xe8] sm:$0xff]
    %v746 = vld [vmem:[#allocation7 + $0xf0] sm:$0xff]
    %v747 = vld [vmem:[#allocation7 + $0xf8] sm:$0xff]
    %v748 = vld [vmem:[#allocation7 + $0x100] sm:$0xff]
    %v749 = vld [vmem:[#allocation7 + $0x108] sm:$0xff]
    %v750 = vld [vmem:[#allocation7 + $0x110] sm:$0xff]
    %v751 = vld [vmem:[#allocation7 + $0x118] sm:$0xff]
    %v752 = vld [vmem:[#allocation7 + $0x120] sm:$0xff]
    %v753 = vld [vmem:[#allocation7 + $0x128] sm:$0xff]
    %v754 = vld [vmem:[#allocation7 + $0x130] sm:$0xff]
    %v755 = vld [vmem:[#allocation7 + $0x138] sm:$0xff]
    %v756 = vld [vmem:[#allocation7 + $0x140] sm:$0xff]
    %v757 = vld [vmem:[#allocation7 + $0x148] sm:$0xff]
    %v758 = vld [vmem:[#allocation7 + $0x150] sm:$0xff]
    %v759 = vld [vmem:[#allocation7 + $0x158] sm:$0xff]
    %v760 = vld [vmem:[#allocation7 + $0x160] sm:$0xff]
    %v761 = vld [vmem:[#allocation7 + $0x168] sm:$0xff]
    %v762 = vld [vmem:[#allocation7 + $0x170] sm:$0xff]
    %v763 = vld [vmem:[#allocation7 + $0x178] sm:$0xff]
    %v764 = vld [vmem:[#allocation7 + $0x180] sm:$0xff]
    %v765 = vld [vmem:[#allocation7 + $0x188] sm:$0xff]
    %v766 = vld [vmem:[#allocation7 + $0x190] sm:$0xff]
    %v767 = vld [vmem:[#allocation7 + $0x198] sm:$0xff]
    %v768 = vld [vmem:[#allocation7 + $0x1a0] sm:$0xff]
    %v769 = vld [vmem:[#allocation7 + $0x1a8] sm:$0xff]
    %v770 = vld [vmem:[#allocation7 + $0x1b0] sm:$0xff]
    %v771 = vld [vmem:[#allocation7 + $0x1b8] sm:$0xff]
    %v772 = vld [vmem:[#allocation7 + $0x1c0] sm:$0xff]
    %v773 = vld [vmem:[#allocation7 + $0x1c8] sm:$0xff]
    %v774 = vld [vmem:[#allocation7 + $0x1d0] sm:$0xff]
    %v775 = vld [vmem:[#allocation7 + $0x1d8] sm:$0xff]
    %v776 = vld [vmem:[#allocation7 + $0x1e0] sm:$0xff]
    %v777 = vld [vmem:[#allocation7 + $0x1e8] sm:$0xff]
    %v778 = vld [vmem:[#allocation7 + $0x1f0] sm:$0xff]
    %v779 = vld [vmem:[#allocation7 + $0x1f8] sm:$0xff]
    %780 = vmatpush.msra.mxu0 %v731
    %781 = vmatpush.msra.mxu0 %v730
    %782 = vmatpush.msra.mxu0 %v729
    %783 = vmatpush.msra.mxu0 %v728
    %784 = vmatpush.msra.mxu0 %v727
    %785 = vmatpush.msra.mxu0 %v726
    %786 = vmatpush.msra.mxu0 %v725
    %787 = vmatpush.msra.mxu0 %v724
    %788 = vmatpush.msra.mxu0 %v723
    %789 = vmatpush.msra.mxu0 %v722
    %790 = vmatpush.msra.mxu0 %v721
    %791 = vmatpush.msra.mxu0 %v720
    %792 = vmatpush.msra.mxu0 %v719
    %793 = vmatpush.msra.mxu0 %v718
    %794 = vmatpush.msra.mxu0 %v717
    %795 = vmatpush.msra.mxu0 %v716
    %796 = vmatmul.f32.gmra.mxu0 %v691
    %v797 = vpop.f32.mrf.mxu0
    %v798 = vadd.f32 0.0, %v797
    %799 = vdwg.mxu0
    %800 = vmatpush.msra.mxu0 %v747
    %801 = vmatpush.msra.mxu0 %v746
    %802 = vmatpush.msra.mxu0 %v745
    %803 = vmatpush.msra.mxu0 %v744
    %804 = vmatpush.msra.mxu0 %v743
    %805 = vmatpush.msra.mxu0 %v742
    %806 = vmatpush.msra.mxu0 %v741
    %807 = vmatpush.msra.mxu0 %v740
    %808 = vmatpush.msra.mxu0 %v739
    %809 = vmatpush.msra.mxu0 %v738
    %810 = vmatpush.msra.mxu0 %v737
    %811 = vmatpush.msra.mxu0 %v736
    %812 = vmatpush.msra.mxu0 %v735
    %813 = vmatpush.msra.mxu0 %v734
    %814 = vmatpush.msra.mxu0 %v733
    %815 = vmatpush.msra.mxu0 %v732
    %816 = vmatmul.f32.gmra.mxu0 %v698
    %v817 = vpop.f32.mrf.mxu0
    %v818 = vadd.f32 %v798, %v817
    %819 = vdwg.mxu0
    %820 = vmatpush.msra.mxu0 %v763
    %821 = vmatpush.msra.mxu0 %v762
    %822 = vmatpush.msra.mxu0 %v761
    %823 = vmatpush.msra.mxu0 %v760
    %824 = vmatpush.msra.mxu0 %v759
    %825 = vmatpush.msra.mxu0 %v758
    %826 = vmatpush.msra.mxu0 %v757
    %827 = vmatpush.msra.mxu0 %v756
    %828 = vmatpush.msra.mxu0 %v755
    %829 = vmatpush.msra.mxu0 %v754
    %830 = vmatpush.msra.mxu0 %v753
    %831 = vmatpush.msra.mxu0 %v752
    %832 = vmatpush.msra.mxu0 %v751
    %833 = vmatpush.msra.mxu0 %v750
    %834 = vmatpush.msra.mxu0 %v749
    %835 = vmatpush.msra.mxu0 %v748
    %836 = vmatmul.f32.gmra.mxu0 %v704
    %v837 = vpop.f32.mrf.mxu0
    %v838 = vadd.f32 %v818, %v837
    %839 = vdwg.mxu0
    %840 = vmatpush.msra.mxu0 %v779
    %841 = vmatpush.msra.mxu0 %v778
    %842 = vmatpush.msra.mxu0 %v777
    %843 = vmatpush.msra.mxu0 %v776
    %844 = vmatpush.msra.mxu0 %v775
    %845 = vmatpush.msra.mxu0 %v774
    %846 = vmatpush.msra.mxu0 %v773
    %847 = vmatpush.msra.mxu0 %v772
    %848 = vmatpush.msra.mxu0 %v771
    %849 = vmatpush.msra.mxu0 %v770
    %850 = vmatpush.msra.mxu0 %v769
    %851 = vmatpush.msra.mxu0 %v768
    %852 = vmatpush.msra.mxu0 %v767
    %853 = vmatpush.msra.mxu0 %v766
    %854 = vmatpush.msra.mxu0 %v765
    %855 = vmatpush.msra.mxu0 %v764
    %856 = vmatmul.f32.gmra.mxu0 %v715
    %v857 = vpop.f32.mrf.mxu0
    %v858 = vadd.f32 %v838, %v857
    %859 = vdwg.mxu0
    %v860 = vld [vmem:[%s9] sm:$0x1]
    %v861 = vld [vmem:[%s10] sm:$0x1]
    %v862 = vld [vmem:[%s11] sm:$0xff]
    %v863 = vld [vmem:[%s11 + $0x8] sm:$0xff]
    %v864 = vld [vmem:[%s11 + $0x10] sm:$0xff]
    %v865 = vld [vmem:[%s11 + $0x18] sm:$0xff]
    %v866 = vld [vmem:[%s11 + $0x20] sm:$0xff]
    %v867 = vld [vmem:[%s11 + $0x28] sm:$0xff]
    %v868 = vld [vmem:[%s11 + $0x30] sm:$0xff]
    %v869 = vld [vmem:[%s11 + $0x38] sm:$0xff]
    %v870 = vld [vmem:[%s11 + $0x40] sm:$0xff]
    %v871 = vld [vmem:[%s11 + $0x48] sm:$0xff]
    %v872 = vld [vmem:[%s11 + $0x50] sm:$0xff]
    %v873 = vld [vmem:[%s11 + $0x58] sm:$0xff]
    %v874 = vld [vmem:[%s11 + $0x60] sm:$0xff]
    %v875 = vld [vmem:[%s11 + $0x68] sm:$0xff]
    %v876 = vld [vmem:[%s11 + $0x70] sm:$0xff]
    %v877 = vld [vmem:[%s11 + $0x78] sm:$0xff]
    %v878 = vld [vmem:[%s12] sm:$0xff]
    %v879 = vld [vmem:[%s12 + $0x8] sm:$0xff]
    %v880 = vld [vmem:[%s12 + $0x10] sm:$0xff]
    %v881 = vld [vmem:[%s12 + $0x18] sm:$0xff]
    %v882 = vrot.slane %v858, 4
    %v883 = vadd.f32 %v858, %v882
    %v884 = vrot.slane %v883, 2
    %v885 = vadd.f32 %v883, %v884
    %v886 = vrot.slane %v885, 1
    %v887 = vadd.f32 %v885, %v886
    %v888 = vmul.f32 %v858, %v858
    %v889 = vrot.slane %v888, 4
    %v890 = vadd.f32 %v888, %v889
    %v891 = vrot.slane %v890, 2
    %v892 = vadd.f32 %v890, %v891
    %v893 = vrot.slane %v892, 1
    %v894 = vadd.f32 %v892, %v893
    %v895 = vsel %vm139, %v887, %v894
    %896 = vmatpush.msra.mxu0 %v877
    %897 = vmatpush.msra.mxu0 %v876
    %898 = vmatpush.msra.mxu0 %v875
    %899 = vmatpush.msra.mxu0 %v874
    %900 = vmatpush.msra.mxu0 %v873
    %901 = vmatpush.msra.mxu0 %v872
    %902 = vmatpush.msra.mxu0 %v871
    %903 = vmatpush.msra.mxu0 %v870
    %904 = vmatpush.msra.mxu0 %v869
    %905 = vmatpush.msra.mxu0 %v868
    %906 = vmatpush.msra.mxu0 %v867
    %907 = vmatpush.msra.mxu0 %v866
    %908 = vmatpush.msra.mxu0 %v865
    %909 = vmatpush.msra.mxu0 %v864
    %910 = vmatpush.msra.mxu0 %v863
    %911 = vmatpush.msra.mxu0 %v862
    %912 = vmatmul.f32.gmra.mxu0 %v895
    %v913 = vpop.f32.mrf.mxu0
    %v914 = vadd.f32 0.0, %v913
    %915 = vdwg.mxu0
    %v916 = vmul.f32 %v914, 0.03125
    %v917 = vmul.f32 %v916, %v916
    %v919 = vrot.slane %v917, 7
    %v921 = vsub.f32 %v916, %v919
    %v922 = vadd.f32 %v921, 1e-05
    %v923 = vrsqrt.pop %v922
    %v924 = vmul.f32 %v923, %v922
    %v925 = vmul.f32 %v924, %v923
    %v926 = vmul.f32 0.5, %v925
    %v927 = vsub.f32 1.5, %v926
    %v928 = vmul.f32 %v923, %v927
    %vm929 = vweird.f32 %v922
    %vm930 = vweird.f32 %v923
    %vm931 = vmor %vm929, %vm930
    %v932 = vsel %vm931, %v923, %v928
    %934 = vst [vmem:[#allocation1] sm:$0xff] %v932
    %s935 = scalar_lea.vmem [#allocation1], 1
    %v936 = vld [vmem:[%s935] ss:$9 sm:$0xff]
    %v938 = vmul.f32 %v860, %v936
    %v939 = vmul.f32 %v916, %v938
    %v940 = vsub.f32 %v861, %v939
    %v942 = vperm.slane %v940, 0
    %v944 = vsel %vm139, %v938, %v942
    %vm945 = vcmask 261120
    %v947 = vsel %vm945, %v944, 0
    %949 = vmatpush.msra.mxu0 0.0
    %950 = vmatpush.msra.mxu0 0.0
    %951 = vmatpush.msra.mxu0 0.0
    %952 = vmatpush.msra.mxu0 0.0
    %953 = vmatpush.msra.mxu0 0.0
    %954 = vmatpush.msra.mxu0 0.0
    %955 = vmatpush.msra.mxu0 0.0
    %956 = vmatpush.msra.mxu0 0.0
    %957 = vmatpush.msra.mxu0 0.0
    %958 = vmatpush.msra.mxu0 0.0
    %959 = vmatpush.msra.mxu0 0.0
    %960 = vmatpush.msra.mxu0 0.0
    %961 = vmatpush.msra.mxu0 %v881
    %962 = vmatpush.msra.mxu0 %v880
    %963 = vmatpush.msra.mxu0 %v879
    %964 = vmatpush.msra.mxu0 %v878
    %965 = vmatmul.f32.gmra.mxu0 %v947
    %v966 = vpop.f32.mrf.mxu0
    %v967 = vadd.f32 0.0, %v966
    %968 = vdwg.mxu0
    %v969 = vperm.slane %v967, 0
    %v970 = vmul.f32 %v858, %v969
    %v971 = vperm.slane %v967, 1
    %v972 = vadd.f32 %v970, %v971
    %vm973 = vcmp.ge.f32.partialorder %v972, 0.0
    %v974 = vmul.f32 %v972, 0.2
    %v975 = vsel %vm973, %v972, %v974
    %v977 = vrot.slane %v975, 7
    %v979 = vsel %vm139, 0.0, %v977
    %v980 = vsel %vm712, %v979, 0.0
    %v981 = vsel %vm688, %v980, %v975
    %v982 = vrot.slane %v975, 1
    %v984 = vsel %vm712, %v975, %v982
    %v985 = vrot.slane %v975, 2
    %v987 = vsel %vm712, %v982, %v985
    %v988 = vrot.slane %v975, 3
    %vm990 = vcmask 1041408
    %v991 = vsel %vm990, %v985, 0.0
    %v992 = vsel %vm712, %v991, %v988
    %v993 = vsel %vm690, %v992, 0.0
    %v994 = vld [vmem:[#allocation9] sm:$0xff]
    %v995 = vld [vmem:[#allocation9 + $0x8] sm:$0xff]
    %v996 = vld [vmem:[#allocation9 + $0x10] sm:$0xff]
    %v997 = vld [vmem:[#allocation9 + $0x18] sm:$0xff]
    %v998 = vld [vmem:[#allocation9 + $0x20] sm:$0xff]
    %v999 = vld [vmem:[#allocation9 + $0x28] sm:$0xff]
    %v1000 = vld [vmem:[#allocation9 + $0x30] sm:$0xff]
    %v1001 = vld [vmem:[#allocation9 + $0x38] sm:$0xff]
    %v1002 = vld [vmem:[#allocation9 + $0x40] sm:$0xff]
    %v1003 = vld [vmem:[#allocation9 + $0x48] sm:$0xff]
    %v1004 = vld [vmem:[#allocation9 + $0x50] sm:$0xff]
    %v1005 = vld [vmem:[#allocation9 + $0x58] sm:$0xff]
    %v1006 = vld [vmem:[#allocation9 + $0x60] sm:$0xff]
    %v1007 = vld [vmem:[#allocation9 + $0x68] sm:$0xff]
    %v1008 = vld [vmem:[#allocation9 + $0x70] sm:$0xff]
    %v1009 = vld [vmem:[#allocation9 + $0x78] sm:$0xff]
    %v1010 = vld [vmem:[#allocation9 + $0x80] sm:$0xff]
    %v1011 = vld [vmem:[#allocation9 + $0x88] sm:$0xff]
    %v1012 = vld [vmem:[#allocation9 + $0x90] sm:$0xff]
    %v1013 = vld [vmem:[#allocation9 + $0x98] sm:$0xff]
    %v1014 = vld [vmem:[#allocation9 + $0xa0] sm:$0xff]
    %v1015 = vld [vmem:[#allocation9 + $0xa8] sm:$0xff]
    %v1016 = vld [vmem:[#allocation9 + $0xb0] sm:$0xff]
    %v1017 = vld [vmem:[#allocation9 + $0xb8] sm:$0xff]
    %v1018 = vld [vmem:[#allocation9 + $0xc0] sm:$0xff]
    %v1019 = vld [vmem:[#allocation9 + $0xc8] sm:$0xff]
    %v1020 = vld [vmem:[#allocation9 + $0xd0] sm:$0xff]
    %v1021 = vld [vmem:[#allocation9 + $0xd8] sm:$0xff]
    %v1022 = vld [vmem:[#allocation9 + $0xe0] sm:$0xff]
    %v1023 = vld [vmem:[#allocation9 + $0xe8] sm:$0xff]
    %v1024 = vld [vmem:[#allocation9 + $0xf0] sm:$0xff]
    %v1025 = vld [vmem:[#allocation9 + $0xf8] sm:$0xff]
    %v1026 = vld [vmem:[#allocation9 + $0x100] sm:$0xff]
    %v1027 = vld [vmem:[#allocation9 + $0x108] sm:$0xff]
    %v1028 = vld [vmem:[#allocation9 + $0x110] sm:$0xff]
    %v1029 = vld [vmem:[#allocation9 + $0x118] sm:$0xff]
    %v1030 = vld [vmem:[#allocation9 + $0x120] sm:$0xff]
    %v1031 = vld [vmem:[#allocation9 + $0x128] sm:$0xff]
    %v1032 = vld [vmem:[#allocation9 + $0x130] sm:$0xff]
    %v1033 = vld [vmem:[#allocation9 + $0x138] sm:$0xff]
    %v1034 = vld [vmem:[#allocation9 + $0x140] sm:$0xff]
    %v1035 = vld [vmem:[#allocation9 + $0x148] sm:$0xff]
    %v1036 = vld [vmem:[#allocation9 + $0x150] sm:$0xff]
    %v1037 = vld [vmem:[#allocation9 + $0x158] sm:$0xff]
    %v1038 = vld [vmem:[#allocation9 + $0x160] sm:$0xff]
    %v1039 = vld [vmem:[#allocation9 + $0x168] sm:$0xff]
    %v1040 = vld [vmem:[#allocation9 + $0x170] sm:$0xff]
    %v1041 = vld [vmem:[#allocation9 + $0x178] sm:$0xff]
    %v1042 = vld [vmem:[#allocation9 + $0x180] sm:$0xff]
    %v1043 = vld [vmem:[#allocation9 + $0x188] sm:$0xff]
    %v1044 = vld [vmem:[#allocation9 + $0x190] sm:$0xff]
    %v1045 = vld [vmem:[#allocation9 + $0x198] sm:$0xff]
    %v1046 = vld [vmem:[#allocation9 + $0x1a0] sm:$0xff]
    %v1047 = vld [vmem:[#allocation9 + $0x1a8] sm:$0xff]
    %v1048 = vld [vmem:[#allocation9 + $0x1b0] sm:$0xff]
    %v1049 = vld [vmem:[#allocation9 + $0x1b8] sm:$0xff]
    %v1050 = vld [vmem:[#allocation9 + $0x1c0] sm:$0xff]
    %v1051 = vld [vmem:[#allocation9 + $0x1c8] sm:$0xff]
    %v1052 = vld [vmem:[#allocation9 + $0x1d0] sm:$0xff]
    %v1053 = vld [vmem:[#allocation9 + $0x1d8] sm:$0xff]
    %v1054 = vld [vmem:[#allocation9 + $0x1e0] sm:$0xff]
    %v1055 = vld [vmem:[#allocation9 + $0x1e8] sm:$0xff]
    %v1056 = vld [vmem:[#allocation9 + $0x1f0] sm:$0xff]
    %v1057 = vld [vmem:[#allocation9 + $0x1f8] sm:$0xff]
    %v1058 = vld [vmem:[#allocation9 + $0x200] sm:$0xff]
    %v1059 = vld [vmem:[#allocation9 + $0x208] sm:$0xff]
    %v1060 = vld [vmem:[#allocation9 + $0x210] sm:$0xff]
    %v1061 = vld [vmem:[#allocation9 + $0x218] sm:$0xff]
    %v1062 = vld [vmem:[#allocation9 + $0x220] sm:$0xff]
    %v1063 = vld [vmem:[#allocation9 + $0x228] sm:$0xff]
    %v1064 = vld [vmem:[#allocation9 + $0x230] sm:$0xff]
    %v1065 = vld [vmem:[#allocation9 + $0x238] sm:$0xff]
    %v1066 = vld [vmem:[#allocation9 + $0x240] sm:$0xff]
    %v1067 = vld [vmem:[#allocation9 + $0x248] sm:$0xff]
    %v1068 = vld [vmem:[#allocation9 + $0x250] sm:$0xff]
    %v1069 = vld [vmem:[#allocation9 + $0x258] sm:$0xff]
    %v1070 = vld [vmem:[#allocation9 + $0x260] sm:$0xff]
    %v1071 = vld [vmem:[#allocation9 + $0x268] sm:$0xff]
    %v1072 = vld [vmem:[#allocation9 + $0x270] sm:$0xff]
    %v1073 = vld [vmem:[#allocation9 + $0x278] sm:$0xff]
    %v1074 = vld [vmem:[#allocation9 + $0x280] sm:$0xff]
    %v1075 = vld [vmem:[#allocation9 + $0x288] sm:$0xff]
    %v1076 = vld [vmem:[#allocation9 + $0x290] sm:$0xff]
    %v1077 = vld [vmem:[#allocation9 + $0x298] sm:$0xff]
    %v1078 = vld [vmem:[#allocation9 + $0x2a0] sm:$0xff]
    %v1079 = vld [vmem:[#allocation9 + $0x2a8] sm:$0xff]
    %v1080 = vld [vmem:[#allocation9 + $0x2b0] sm:$0xff]
    %v1081 = vld [vmem:[#allocation9 + $0x2b8] sm:$0xff]
    %v1082 = vld [vmem:[#allocation9 + $0x2c0] sm:$0xff]
    %v1083 = vld [vmem:[#allocation9 + $0x2c8] sm:$0xff]
    %v1084 = vld [vmem:[#allocation9 + $0x2d0] sm:$0xff]
    %v1085 = vld [vmem:[#allocation9 + $0x2d8] sm:$0xff]
    %v1086 = vld [vmem:[#allocation9 + $0x2e0] sm:$0xff]
    %v1087 = vld [vmem:[#allocation9 + $0x2e8] sm:$0xff]
    %v1088 = vld [vmem:[#allocation9 + $0x2f0] sm:$0xff]
    %v1089 = vld [vmem:[#allocation9 + $0x2f8] sm:$0xff]
    %v1090 = vld [vmem:[#allocation9 + $0x300] sm:$0xff]
    %v1091 = vld [vmem:[#allocation9 + $0x308] sm:$0xff]
    %v1092 = vld [vmem:[#allocation9 + $0x310] sm:$0xff]
    %v1093 = vld [vmem:[#allocation9 + $0x318] sm:$0xff]
    %v1094 = vld [vmem:[#allocation9 + $0x320] sm:$0xff]
    %v1095 = vld [vmem:[#allocation9 + $0x328] sm:$0xff]
    %v1096 = vld [vmem:[#allocation9 + $0x330] sm:$0xff]
    %v1097 = vld [vmem:[#allocation9 + $0x338] sm:$0xff]
    %v1098 = vld [vmem:[#allocation9 + $0x340] sm:$0xff]
    %v1099 = vld [vmem:[#allocation9 + $0x348] sm:$0xff]
    %v1100 = vld [vmem:[#allocation9 + $0x350] sm:$0xff]
    %v1101 = vld [vmem:[#allocation9 + $0x358] sm:$0xff]
    %v1102 = vld [vmem:[#allocation9 + $0x360] sm:$0xff]
    %v1103 = vld [vmem:[#allocation9 + $0x368] sm:$0xff]
    %v1104 = vld [vmem:[#allocation9 + $0x370] sm:$0xff]
    %v1105 = vld [vmem:[#allocation9 + $0x378] sm:$0xff]
    %v1106 = vld [vmem:[#allocation9 + $0x380] sm:$0xff]
    %v1107 = vld [vmem:[#allocation9 + $0x388] sm:$0xff]
    %v1108 = vld [vmem:[#allocation9 + $0x390] sm:$0xff]
    %v1109 = vld [vmem:[#allocation9 + $0x398] sm:$0xff]
    %v1110 = vld [vmem:[#allocation9 + $0x3a0] sm:$0xff]
    %v1111 = vld [vmem:[#allocation9 + $0x3a8] sm:$0xff]
    %v1112 = vld [vmem:[#allocation9 + $0x3b0] sm:$0xff]
    %v1113 = vld [vmem:[#allocation9 + $0x3b8] sm:$0xff]
    %v1114 = vld [vmem:[#allocation9 + $0x3c0] sm:$0xff]
    %v1115 = vld [vmem:[#allocation9 + $0x3c8] sm:$0xff]
    %v1116 = vld [vmem:[#allocation9 + $0x3d0] sm:$0xff]
    %v1117 = vld [vmem:[#allocation9 + $0x3d8] sm:$0xff]
    %v1118 = vld [vmem:[#allocation9 + $0x3e0] sm:$0xff]
    %v1119 = vld [vmem:[#allocation9 + $0x3e8] sm:$0xff]
    %v1120 = vld [vmem:[#allocation9 + $0x3f0] sm:$0xff]
    %v1121 = vld [vmem:[#allocation9 + $0x3f8] sm:$0xff]
    %1122 = vmatpush.msra.mxu0 %v1024
    %1123 = vmatpush.msra.mxu0 %v1022
    %1124 = vmatpush.msra.mxu0 %v1020
    %1125 = vmatpush.msra.mxu0 %v1018
    %1126 = vmatpush.msra.mxu0 %v1016
    %1127 = vmatpush.msra.mxu0 %v1014
    %1128 = vmatpush.msra.mxu0 %v1012
    %1129 = vmatpush.msra.mxu0 %v1010
    %1130 = vmatpush.msra.mxu0 %v1008
    %1131 = vmatpush.msra.mxu0 %v1006
    %1132 = vmatpush.msra.mxu0 %v1004
    %1133 = vmatpush.msra.mxu0 %v1002
    %1134 = vmatpush.msra.mxu0 %v1000
    %1135 = vmatpush.msra.mxu0 %v998
    %1136 = vmatpush.msra.mxu0 %v996
    %1137 = vmatpush.msra.mxu0 %v994
    %1138 = vmatmul.f32.gmra.mxu0 %v981
    %v1139 = vpop.f32.mrf.mxu0
    %v1140 = vadd.f32 0.0, %v1139
    %1141 = vdwg.mxu0
    %1142 = vmatpush.msra.mxu0 %v1056
    %1143 = vmatpush.msra.mxu0 %v1054
    %1144 = vmatpush.msra.mxu0 %v1052
    %1145 = vmatpush.msra.mxu0 %v1050
    %1146 = vmatpush.msra.mxu0 %v1048
    %1147 = vmatpush.msra.mxu0 %v1046
    %1148 = vmatpush.msra.mxu0 %v1044
    %1149 = vmatpush.msra.mxu0 %v1042
    %1150 = vmatpush.msra.mxu0 %v1040
    %1151 = vmatpush.msra.mxu0 %v1038
    %1152 = vmatpush.msra.mxu0 %v1036
    %1153 = vmatpush.msra.mxu0 %v1034
    %1154 = vmatpush.msra.mxu0 %v1032
    %1155 = vmatpush.msra.mxu0 %v1030
    %1156 = vmatpush.msra.mxu0 %v1028
    %1157 = vmatpush.msra.mxu0 %v1026
    %1158 = vmatmul.f32.gmra.mxu0 %v984
    %v1159 = vpop.f32.mrf.mxu0
    %v1160 = vadd.f32 %v1140, %v1159
    %1161 = vdwg.mxu0
    %1162 = vmatpush.msra.mxu0 %v1088
    %1163 = vmatpush.msra.mxu0 %v1086
    %1164 = vmatpush.msra.mxu0 %v1084
    %1165 = vmatpush.msra.mxu0 %v1082
    %1166 = vmatpush.msra.mxu0 %v1080
    %1167 = vmatpush.msra.mxu0 %v1078
    %1168 = vmatpush.msra.mxu0 %v1076
    %1169 = vmatpush.msra.mxu0 %v1074
    %1170 = vmatpush.msra.mxu0 %v1072
    %1171 = vmatpush.msra.mxu0 %v1070
    %1172 = vmatpush.msra.mxu0 %v1068
    %1173 = vmatpush.msra.mxu0 %v1066
    %1174 = vmatpush.msra.mxu0 %v1064
    %1175 = vmatpush.msra.mxu0 %v1062
    %1176 = vmatpush.msra.mxu0 %v1060
    %1177 = vmatpush.msra.mxu0 %v1058
    %1178 = vmatmul.f32.gmra.mxu0 %v987
    %v1179 = vpop.f32.mrf.mxu0
    %v1180 = vadd.f32 %v1160, %v1179
    %1181 = vdwg.mxu0
    %1182 = vmatpush.msra.mxu0 %v1120
    %1183 = vmatpush.msra.mxu0 %v1118
    %1184 = vmatpush.msra.mxu0 %v1116
    %1185 = vmatpush.msra.mxu0 %v1114
    %1186 = vmatpush.msra.mxu0 %v1112
    %1187 = vmatpush.msra.mxu0 %v1110
    %1188 = vmatpush.msra.mxu0 %v1108
    %1189 = vmatpush.msra.mxu0 %v1106
    %1190 = vmatpush.msra.mxu0 %v1104
    %1191 = vmatpush.msra.mxu0 %v1102
    %1192 = vmatpush.msra.mxu0 %v1100
    %1193 = vmatpush.msra.mxu0 %v1098
    %1194 = vmatpush.msra.mxu0 %v1096
    %1195 = vmatpush.msra.mxu0 %v1094
    %1196 = vmatpush.msra.mxu0 %v1092
    %1197 = vmatpush.msra.mxu0 %v1090
    %1198 = vmatmul.f32.gmra.mxu0 %v993
    %v1199 = vpop.f32.mrf.mxu0
    %v1200 = vadd.f32 %v1180, %v1199
    %1201 = vdwg.mxu0
    %1202 = vmatpush.msra.mxu0 %v1025
    %1203 = vmatpush.msra.mxu0 %v1023
    %1204 = vmatpush.msra.mxu0 %v1021
    %1205 = vmatpush.msra.mxu0 %v1019
    %1206 = vmatpush.msra.mxu0 %v1017
    %1207 = vmatpush.msra.mxu0 %v1015
    %1208 = vmatpush.msra.mxu0 %v1013
    %1209 = vmatpush.msra.mxu0 %v1011
    %1210 = vmatpush.msra.mxu0 %v1009
    %1211 = vmatpush.msra.mxu0 %v1007
    %1212 = vmatpush.msra.mxu0 %v1005
    %1213 = vmatpush.msra.mxu0 %v1003
    %1214 = vmatpush.msra.mxu0 %v1001
    %1215 = vmatpush.msra.mxu0 %v999
    %1216 = vmatpush.msra.mxu0 %v997
    %1217 = vmatpush.msra.mxu0 %v995
    %1218 = vmatmul.f32.gmra.mxu0 %v981
    %v1219 = vpop.f32.mrf.mxu0
    %v1220 = vadd.f32 0.0, %v1219
    %1221 = vdwg.mxu0
    %1222 = vmatpush.msra.mxu0 %v1057
    %1223 = vmatpush.msra.mxu0 %v1055
    %1224 = vmatpush.msra.mxu0 %v1053
    %1225 = vmatpush.msra.mxu0 %v1051
    %1226 = vmatpush.msra.mxu0 %v1049
    %1227 = vmatpush.msra.mxu0 %v1047
    %1228 = vmatpush.msra.mxu0 %v1045
    %1229 = vmatpush.msra.mxu0 %v1043
    %1230 = vmatpush.msra.mxu0 %v1041
    %1231 = vmatpush.msra.mxu0 %v1039
    %1232 = vmatpush.msra.mxu0 %v1037
    %1233 = vmatpush.msra.mxu0 %v1035
    %1234 = vmatpush.msra.mxu0 %v1033
    %1235 = vmatpush.msra.mxu0 %v1031
    %1236 = vmatpush.msra.mxu0 %v1029
    %1237 = vmatpush.msra.mxu0 %v1027
    %1238 = vmatmul.f32.gmra.mxu0 %v984
    %v1239 = vpop.f32.mrf.mxu0
    %v1240 = vadd.f32 %v1220, %v1239
    %1241 = vdwg.mxu0
    %1242 = vmatpush.msra.mxu0 %v1089
    %1243 = vmatpush.msra.mxu0 %v1087
    %1244 = vmatpush.msra.mxu0 %v1085
    %1245 = vmatpush.msra.mxu0 %v1083
    %1246 = vmatpush.msra.mxu0 %v1081
    %1247 = vmatpush.msra.mxu0 %v1079
    %1248 = vmatpush.msra.mxu0 %v1077
    %1249 = vmatpush.msra.mxu0 %v1075
    %1250 = vmatpush.msra.mxu0 %v1073
    %1251 = vmatpush.msra.mxu0 %v1071
    %1252 = vmatpush.msra.mxu0 %v1069
    %1253 = vmatpush.msra.mxu0 %v1067
    %1254 = vmatpush.msra.mxu0 %v1065
    %1255 = vmatpush.msra.mxu0 %v1063
    %1256 = vmatpush.msra.mxu0 %v1061
    %1257 = vmatpush.msra.mxu0 %v1059
    %1258 = vmatmul.f32.gmra.mxu0 %v987
    %v1259 = vpop.f32.mrf.mxu0
    %v1260 = vadd.f32 %v1240, %v1259
    %1261 = vdwg.mxu0
    %1262 = vmatpush.msra.mxu0 %v1121
    %1263 = vmatpush.msra.mxu0 %v1119
    %1264 = vmatpush.msra.mxu0 %v1117
    %1265 = vmatpush.msra.mxu0 %v1115
    %1266 = vmatpush.msra.mxu0 %v1113
    %1267 = vmatpush.msra.mxu0 %v1111
    %1268 = vmatpush.msra.mxu0 %v1109
    %1269 = vmatpush.msra.mxu0 %v1107
    %1270 = vmatpush.msra.mxu0 %v1105
    %1271 = vmatpush.msra.mxu0 %v1103
    %1272 = vmatpush.msra.mxu0 %v1101
    %1273 = vmatpush.msra.mxu0 %v1099
    %1274 = vmatpush.msra.mxu0 %v1097
    %1275 = vmatpush.msra.mxu0 %v1095
    %1276 = vmatpush.msra.mxu0 %v1093
    %1277 = vmatpush.msra.mxu0 %v1091
    %1278 = vmatmul.f32.gmra.mxu0 %v993
    %v1279 = vpop.f32.mrf.mxu0
    %v1280 = vadd.f32 %v1260, %v1279
    %1281 = vdwg.mxu0
    %v1282 = vld [vmem:[%s14] sm:$0x1]
    %v1283 = vld [vmem:[%s15] sm:$0x1]
    %v1284 = vld [vmem:[%s16] sm:$0xff]
    %v1285 = vld [vmem:[%s16 + $0x8] sm:$0xff]
    %v1286 = vld [vmem:[%s16 + $0x10] sm:$0xff]
    %v1287 = vld [vmem:[%s16 + $0x18] sm:$0xff]
    %v1288 = vld [vmem:[%s16 + $0x20] sm:$0xff]
    %v1289 = vld [vmem:[%s16 + $0x28] sm:$0xff]
    %v1290 = vld [vmem:[%s16 + $0x30] sm:$0xff]
    %v1291 = vld [vmem:[%s16 + $0x38] sm:$0xff]
    %v1292 = vld [vmem:[%s16 + $0x40] sm:$0xff]
    %v1293 = vld [vmem:[%s16 + $0x48] sm:$0xff]
    %v1294 = vld [vmem:[%s16 + $0x50] sm:$0xff]
    %v1295 = vld [vmem:[%s16 + $0x58] sm:$0xff]
    %v1296 = vld [vmem:[%s16 + $0x60] sm:$0xff]
    %v1297 = vld [vmem:[%s16 + $0x68] sm:$0xff]
    %v1298 = vld [vmem:[%s16 + $0x70] sm:$0xff]
    %v1299 = vld [vmem:[%s16 + $0x78] sm:$0xff]
    %v1300 = vld [vmem:[%s16 + $0x80] sm:$0xff]
    %v1301 = vld [vmem:[%s16 + $0x88] sm:$0xff]
    %v1302 = vld [vmem:[%s16 + $0x90] sm:$0xff]
    %v1303 = vld [vmem:[%s16 + $0x98] sm:$0xff]
    %v1304 = vld [vmem:[%s16 + $0xa0] sm:$0xff]
    %v1305 = vld [vmem:[%s16 + $0xa8] sm:$0xff]
    %v1306 = vld [vmem:[%s16 + $0xb0] sm:$0xff]
    %v1307 = vld [vmem:[%s16 + $0xb8] sm:$0xff]
    %v1308 = vld [vmem:[%s16 + $0xc0] sm:$0xff]
    %v1309 = vld [vmem:[%s16 + $0xc8] sm:$0xff]
    %v1310 = vld [vmem:[%s16 + $0xd0] sm:$0xff]
    %v1311 = vld [vmem:[%s16 + $0xd8] sm:$0xff]
    %v1312 = vld [vmem:[%s16 + $0xe0] sm:$0xff]
    %v1313 = vld [vmem:[%s16 + $0xe8] sm:$0xff]
    %v1314 = vld [vmem:[%s16 + $0xf0] sm:$0xff]
    %v1315 = vld [vmem:[%s16 + $0xf8] sm:$0xff]
    %v1316 = vld [vmem:[%s17] sm:$0xff]
    %v1317 = vld [vmem:[%s17 + $0x8] sm:$0xff]
    %v1318 = vld [vmem:[%s17 + $0x10] sm:$0xff]
    %v1319 = vld [vmem:[%s17 + $0x18] sm:$0xff]
    %v1320 = vld [vmem:[%s17 + $0x20] sm:$0xff]
    %v1321 = vld [vmem:[%s17 + $0x28] sm:$0xff]
    %v1322 = vld [vmem:[%s17 + $0x30] sm:$0xff]
    %v1323 = vld [vmem:[%s17 + $0x38] sm:$0xff]
    %v1324 = vld [vmem:[%s17 + $0x40] sm:$0xff]
    %v1325 = vld [vmem:[%s17 + $0x48] sm:$0xff]
    %v1326 = vld [vmem:[%s17 + $0x50] sm:$0xff]
    %v1327 = vld [vmem:[%s17 + $0x58] sm:$0xff]
    %v1328 = vld [vmem:[%s17 + $0x60] sm:$0xff]
    %v1329 = vld [vmem:[%s17 + $0x68] sm:$0xff]
    %v1330 = vld [vmem:[%s17 + $0x70] sm:$0xff]
    %v1331 = vld [vmem:[%s17 + $0x78] sm:$0xff]
    %vm1332 = vcmask 1045504
    %v1333 = vsel %vm1332, %v1200, 0.0
    %v1334 = vrot.slane %v1333, 4
    %v1335 = vadd.f32 %v1333, %v1334
    %v1336 = vrot.slane %v1335, 2
    %v1337 = vadd.f32 %v1335, %v1336
    %v1338 = vrot.slane %v1337, 1
    %v1339 = vadd.f32 %v1337, %v1338
    %v1340 = vsel %vm1332, %v1280, 0.0
    %v1341 = vrot.slane %v1340, 4
    %v1342 = vadd.f32 %v1340, %v1341
    %v1343 = vrot.slane %v1342, 2
    %v1344 = vadd.f32 %v1342, %v1343
    %v1345 = vrot.slane %v1344, 1
    %v1346 = vadd.f32 %v1344, %v1345
    %v1347 = vmul.f32 %v1200, %v1200
    %v1348 = vmul.f32 %v1280, %v1280
    %v1349 = vsel %vm1332, %v1347, 0.0
    %v1350 = vrot.slane %v1349, 4
    %v1351 = vadd.f32 %v1349, %v1350
    %v1352 = vrot.slane %v1351, 2
    %v1353 = vadd.f32 %v1351, %v1352
    %v1354 = vrot.slane %v1353, 1
    %v1355 = vadd.f32 %v1353, %v1354
    %v1356 = vsel %vm1332, %v1348, 0.0
    %v1357 = vrot.slane %v1356, 4
    %v1358 = vadd.f32 %v1356, %v1357
    %v1359 = vrot.slane %v1358, 2
    %v1360 = vadd.f32 %v1358, %v1359
    %v1361 = vrot.slane %v1360, 1
    %v1362 = vadd.f32 %v1360, %v1361
    %v1363 = vsel %vm139, %v1339, %v1355
    %v1364 = vsel %vm139, %v1346, %v1362
    %1365 = vmatpush.msra.mxu0 %v1299
    %1366 = vmatpush.msra.mxu0 %v1298
    %1367 = vmatpush.msra.mxu0 %v1297
    %1368 = vmatpush.msra.mxu0 %v1296
    %1369 = vmatpush.msra.mxu0 %v1295
    %1370 = vmatpush.msra.mxu0 %v1294
    %1371 = vmatpush.msra.mxu0 %v1293
    %1372 = vmatpush.msra.mxu0 %v1292
    %1373 = vmatpush.msra.mxu0 %v1291
    %1374 = vmatpush.msra.mxu0 %v1290
    %1375 = vmatpush.msra.mxu0 %v1289
    %1376 = vmatpush.msra.mxu0 %v1288
    %1377 = vmatpush.msra.mxu0 %v1287
    %1378 = vmatpush.msra.mxu0 %v1286
    %1379 = vmatpush.msra.mxu0 %v1285
    %1380 = vmatpush.msra.mxu0 %v1284
    %1381 = vmatmul.f32.gmra.mxu0 %v1363
    %v1382 = vpop.f32.mrf.mxu0
    %v1383 = vadd.f32 0.0, %v1382
    %1384 = vdwg.mxu0
    %1385 = vmatpush.msra.mxu0 %v1315
    %1386 = vmatpush.msra.mxu0 %v1314
    %1387 = vmatpush.msra.mxu0 %v1313
    %1388 = vmatpush.msra.mxu0 %v1312
    %1389 = vmatpush.msra.mxu0 %v1311
    %1390 = vmatpush.msra.mxu0 %v1310
    %1391 = vmatpush.msra.mxu0 %v1309
    %1392 = vmatpush.msra.mxu0 %v1308
    %1393 = vmatpush.msra.mxu0 %v1307
    %1394 = vmatpush.msra.mxu0 %v1306
    %1395 = vmatpush.msra.mxu0 %v1305
    %1396 = vmatpush.msra.mxu0 %v1304
    %1397 = vmatpush.msra.mxu0 %v1303
    %1398 = vmatpush.msra.mxu0 %v1302
    %1399 = vmatpush.msra.mxu0 %v1301
    %1400 = vmatpush.msra.mxu0 %v1300
    %1401 = vmatmul.f32.gmra.mxu0 %v1364
    %v1402 = vpop.f32.mrf.mxu0
    %v1403 = vadd.f32 %v1383, %v1402
    %1404 = vdwg.mxu0
    %v1405 = vmul.f32 %v1403, 0.055555556
    %v1406 = vmul.f32 %v1405, %v1405
    %v1408 = vrot.slane %v1406, 7
    %v1410 = vsub.f32 %v1405, %v1408
    %v1411 = vadd.f32 %v1410, 1e-05
    %v1412 = vrsqrt.pop %v1411
    %v1413 = vmul.f32 %v1412, %v1411
    %v1414 = vmul.f32 %v1413, %v1412
    %v1415 = vmul.f32 0.5, %v1414
    %v1416 = vsub.f32 1.5, %v1415
    %v1417 = vmul.f32 %v1412, %v1416
    %vm1418 = vweird.f32 %v1411
    %vm1419 = vweird.f32 %v1412
    %vm1420 = vmor %vm1418, %vm1419
    %v1421 = vsel %vm1420, %v1412, %v1417
    %1423 = vst [vmem:[#allocation1] sm:$0xff] %v1421
    %s1424 = scalar_lea.vmem [#allocation1], 1
    %v1425 = vld [vmem:[%s1424] ss:$9 sm:$0xff]
    %v1427 = vmul.f32 %v1282, %v1425
    %v1428 = vmul.f32 %v1405, %v1427
    %v1429 = vsub.f32 %v1283, %v1428
    %v1431 = vperm.slane %v1429, 0
    %v1433 = vsel %vm139, %v1427, %v1431
    %vm1434 = vcmask 523264
    %v1436 = vsel %vm1434, %v1433, 0
    %1438 = vmatpush.msra.mxu0 0.0
    %1439 = vmatpush.msra.mxu0 0.0
    %1440 = vmatpush.msra.mxu0 0.0
    %1441 = vmatpush.msra.mxu0 0.0
    %1442 = vmatpush.msra.mxu0 0.0
    %1443 = vmatpush.msra.mxu0 0.0
    %1444 = vmatpush.msra.mxu0 0.0
    %1445 = vmatpush.msra.mxu0 0.0
    %1446 = vmatpush.msra.mxu0 %v1330
    %1447 = vmatpush.msra.mxu0 %v1328
    %1448 = vmatpush.msra.mxu0 %v1326
    %1449 = vmatpush.msra.mxu0 %v1324
    %1450 = vmatpush.msra.mxu0 %v1322
    %1451 = vmatpush.msra.mxu0 %v1320
    %1452 = vmatpush.msra.mxu0 %v1318
    %1453 = vmatpush.msra.mxu0 %v1316
    %1454 = vmatmul.f32.gmra.mxu0 %v1436
    %v1455 = vpop.f32.mrf.mxu0
    %v1456 = vadd.f32 0.0, %v1455
    %1457 = vdwg.mxu0
    %1458 = vmatpush.msra.mxu0 0.0
    %1459 = vmatpush.msra.mxu0 0.0
    %1460 = vmatpush.msra.mxu0 0.0
    %1461 = vmatpush.msra.mxu0 0.0
    %1462 = vmatpush.msra.mxu0 0.0
    %1463 = vmatpush.msra.mxu0 0.0
    %1464 = vmatpush.msra.mxu0 0.0
    %1465 = vmatpush.msra.mxu0 0.0
    %1466 = vmatpush.msra.mxu0 %v1331
    %1467 = vmatpush.msra.mxu0 %v1329
    %1468 = vmatpush.msra.mxu0 %v1327
    %1469 = vmatpush.msra.mxu0 %v1325
    %1470 = vmatpush.msra.mxu0 %v1323
    %1471 = vmatpush.msra.mxu0 %v1321
    %1472 = vmatpush.msra.mxu0 %v1319
    %1473 = vmatpush.msra.mxu0 %v1317
    %1474 = vmatmul.f32.gmra.mxu0 %v1436
    %v1475 = vpop.f32.mrf.mxu0
    %v1476 = vadd.f32 0.0, %v1475
    %1477 = vdwg.mxu0
    %v1478 = vperm.slane %v1456, 0
    %v1479 = vperm.slane %v1476, 0
    %v1480 = vmul.f32 %v1200, %v1478
    %v1481 = vmul.f32 %v1280, %v1479
    %v1482 = vperm.slane %v1456, 1
    %v1483 = vperm.slane %v1476, 1
    %v1484 = vadd.f32 %v1480, %v1482
    %v1485 = vadd.f32 %v1481, %v1483
    %vm1486 = vcmp.ge.f32.partialorder %v1484, 0.0
    %vm1487 = vcmp.ge.f32.partialorder %v1485, 0.0
    %v1488 = vmul.f32 %v1484, 0.2
    %v1489 = vmul.f32 %v1485, 0.2
    %v1490 = vsel %vm1486, %v1484, %v1488
    %v1491 = vsel %vm1487, %v1485, %v1489
    %v1494 = vrot.slane %v1490, 7
    %v1495 = vrot.slane %v1491, 7
    %v1498 = vsel %vm139, 0.0, %v1494
    %v1499 = vsel %vm139, 0.0, %v1495
    %v1500 = vsel %vm990, %v1498, 0.0
    %v1501 = vsel %vm990, %v1499, 0.0
    %v1502 = vsel %vm712, %v1500, %v1490
    %v1503 = vsel %vm712, %v1501, %v1491
    %v1504 = vrot.slane %v1490, 1
    %v1505 = vrot.slane %v1491, 1
    %v1508 = vsel %vm990, %v1490, %v1504
    %v1509 = vsel %vm990, %v1491, %v1505
    %v1510 = vrot.slane %v1490, 2
    %v1511 = vrot.slane %v1491, 2
    %v1514 = vsel %vm990, %v1504, %v1510
    %v1515 = vsel %vm990, %v1505, %v1511
    %v1516 = vrot.slane %v1490, 3
    %v1517 = vrot.slane %v1491, 3
    %v1520 = vsel %vm139, %v1510, 0.0
    %v1521 = vsel %vm139, %v1511, 0.0
    %v1522 = vsel %vm990, %v1520, %v1516
    %v1523 = vsel %vm990, %v1521, %v1517
    %v1524 = vsel %vm712, %v1522, 0.0
    %v1525 = vsel %vm712, %v1523, 0.0
    %v1526 = vld [vmem:[#allocation10] sm:$0xff]
    %v1527 = vld [vmem:[#allocation10 + $0x8] sm:$0xff]
    %v1528 = vld [vmem:[#allocation10 + $0x10] sm:$0xff]
    %v1529 = vld [vmem:[#allocation10 + $0x18] sm:$0xff]
    %v1530 = vld [vmem:[#allocation10 + $0x20] sm:$0xff]
    %v1531 = vld [vmem:[#allocation10 + $0x28] sm:$0xff]
    %v1532 = vld [vmem:[#allocation10 + $0x30] sm:$0xff]
    %v1533 = vld [vmem:[#allocation10 + $0x38] sm:$0xff]
    %v1534 = vld [vmem:[#allocation10 + $0x40] sm:$0xff]
    %v1535 = vld [vmem:[#allocation10 + $0x48] sm:$0xff]
    %v1536 = vld [vmem:[#allocation10 + $0x50] sm:$0xff]
    %v1537 = vld [vmem:[#allocation10 + $0x58] sm:$0xff]
    %v1538 = vld [vmem:[#allocation10 + $0x60] sm:$0xff]
    %v1539 = vld [vmem:[#allocation10 + $0x68] sm:$0xff]
    %v1540 = vld [vmem:[#allocation10 + $0x70] sm:$0xff]
    %v1541 = vld [vmem:[#allocation10 + $0x78] sm:$0xff]
    %v1542 = vld [vmem:[#allocation10 + $0x80] sm:$0xff]
    %v1543 = vld [vmem:[#allocation10 + $0x88] sm:$0xff]
    %v1544 = vld [vmem:[#allocation10 + $0x90] sm:$0xff]
    %v1545 = vld [vmem:[#allocation10 + $0x98] sm:$0xff]
    %v1546 = vld [vmem:[#allocation10 + $0xa0] sm:$0xff]
    %v1547 = vld [vmem:[#allocation10 + $0xa8] sm:$0xff]
    %v1548 = vld [vmem:[#allocation10 + $0xb0] sm:$0xff]
    %v1549 = vld [vmem:[#allocation10 + $0xb8] sm:$0xff]
    %v1550 = vld [vmem:[#allocation10 + $0xc0] sm:$0xff]
    %v1551 = vld [vmem:[#allocation10 + $0xc8] sm:$0xff]
    %v1552 = vld [vmem:[#allocation10 + $0xd0] sm:$0xff]
    %v1553 = vld [vmem:[#allocation10 + $0xd8] sm:$0xff]
    %v1554 = vld [vmem:[#allocation10 + $0xe0] sm:$0xff]
    %v1555 = vld [vmem:[#allocation10 + $0xe8] sm:$0xff]
    %v1556 = vld [vmem:[#allocation10 + $0xf0] sm:$0xff]
    %v1557 = vld [vmem:[#allocation10 + $0xf8] sm:$0xff]
    %v1558 = vld [vmem:[#allocation10 + $0x100] sm:$0xff]
    %v1559 = vld [vmem:[#allocation10 + $0x108] sm:$0xff]
    %v1560 = vld [vmem:[#allocation10 + $0x110] sm:$0xff]
    %v1561 = vld [vmem:[#allocation10 + $0x118] sm:$0xff]
    %v1562 = vld [vmem:[#allocation10 + $0x120] sm:$0xff]
    %v1563 = vld [vmem:[#allocation10 + $0x128] sm:$0xff]
    %v1564 = vld [vmem:[#allocation10 + $0x130] sm:$0xff]
    %v1565 = vld [vmem:[#allocation10 + $0x138] sm:$0xff]
    %v1566 = vld [vmem:[#allocation10 + $0x140] sm:$0xff]
    %v1567 = vld [vmem:[#allocation10 + $0x148] sm:$0xff]
    %v1568 = vld [vmem:[#allocation10 + $0x150] sm:$0xff]
    %v1569 = vld [vmem:[#allocation10 + $0x158] sm:$0xff]
    %v1570 = vld [vmem:[#allocation10 + $0x160] sm:$0xff]
    %v1571 = vld [vmem:[#allocation10 + $0x168] sm:$0xff]
    %v1572 = vld [vmem:[#allocation10 + $0x170] sm:$0xff]
    %v1573 = vld [vmem:[#allocation10 + $0x178] sm:$0xff]
    %v1574 = vld [vmem:[#allocation10 + $0x180] sm:$0xff]
    %v1575 = vld [vmem:[#allocation10 + $0x188] sm:$0xff]
    %v1576 = vld [vmem:[#allocation10 + $0x190] sm:$0xff]
    %v1577 = vld [vmem:[#allocation10 + $0x198] sm:$0xff]
    %v1578 = vld [vmem:[#allocation10 + $0x1a0] sm:$0xff]
    %v1579 = vld [vmem:[#allocation10 + $0x1a8] sm:$0xff]
    %v1580 = vld [vmem:[#allocation10 + $0x1b0] sm:$0xff]
    %v1581 = vld [vmem:[#allocation10 + $0x1b8] sm:$0xff]
    %v1582 = vld [vmem:[#allocation10 + $0x1c0] sm:$0xff]
    %v1583 = vld [vmem:[#allocation10 + $0x1c8] sm:$0xff]
    %v1584 = vld [vmem:[#allocation10 + $0x1d0] sm:$0xff]
    %v1585 = vld [vmem:[#allocation10 + $0x1d8] sm:$0xff]
    %v1586 = vld [vmem:[#allocation10 + $0x1e0] sm:$0xff]
    %v1587 = vld [vmem:[#allocation10 + $0x1e8] sm:$0xff]
    %v1588 = vld [vmem:[#allocation10 + $0x1f0] sm:$0xff]
    %v1589 = vld [vmem:[#allocation10 + $0x1f8] sm:$0xff]
    %v1590 = vld [vmem:[#allocation10 + $0x200] sm:$0xff]
    %v1591 = vld [vmem:[#allocation10 + $0x208] sm:$0xff]
    %v1592 = vld [vmem:[#allocation10 + $0x210] sm:$0xff]
    %v1593 = vld [vmem:[#allocation10 + $0x218] sm:$0xff]
    %v1594 = vld [vmem:[#allocation10 + $0x220] sm:$0xff]
    %v1595 = vld [vmem:[#allocation10 + $0x228] sm:$0xff]
    %v1596 = vld [vmem:[#allocation10 + $0x230] sm:$0xff]
    %v1597 = vld [vmem:[#allocation10 + $0x238] sm:$0xff]
    %v1598 = vld [vmem:[#allocation10 + $0x240] sm:$0xff]
    %v1599 = vld [vmem:[#allocation10 + $0x248] sm:$0xff]
    %v1600 = vld [vmem:[#allocation10 + $0x250] sm:$0xff]
    %v1601 = vld [vmem:[#allocation10 + $0x258] sm:$0xff]
    %v1602 = vld [vmem:[#allocation10 + $0x260] sm:$0xff]
    %v1603 = vld [vmem:[#allocation10 + $0x268] sm:$0xff]
    %v1604 = vld [vmem:[#allocation10 + $0x270] sm:$0xff]
    %v1605 = vld [vmem:[#allocation10 + $0x278] sm:$0xff]
    %v1606 = vld [vmem:[#allocation10 + $0x280] sm:$0xff]
    %v1607 = vld [vmem:[#allocation10 + $0x288] sm:$0xff]
    %v1608 = vld [vmem:[#allocation10 + $0x290] sm:$0xff]
    %v1609 = vld [vmem:[#allocation10 + $0x298] sm:$0xff]
    %v1610 = vld [vmem:[#allocation10 + $0x2a0] sm:$0xff]
    %v1611 = vld [vmem:[#allocation10 + $0x2a8] sm:$0xff]
    %v1612 = vld [vmem:[#allocation10 + $0x2b0] sm:$0xff]
    %v1613 = vld [vmem:[#allocation10 + $0x2b8] sm:$0xff]
    %v1614 = vld [vmem:[#allocation10 + $0x2c0] sm:$0xff]
    %v1615 = vld [vmem:[#allocation10 + $0x2c8] sm:$0xff]
    %v1616 = vld [vmem:[#allocation10 + $0x2d0] sm:$0xff]
    %v1617 = vld [vmem:[#allocation10 + $0x2d8] sm:$0xff]
    %v1618 = vld [vmem:[#allocation10 + $0x2e0] sm:$0xff]
    %v1619 = vld [vmem:[#allocation10 + $0x2e8] sm:$0xff]
    %v1620 = vld [vmem:[#allocation10 + $0x2f0] sm:$0xff]
    %v1621 = vld [vmem:[#allocation10 + $0x2f8] sm:$0xff]
    %v1622 = vld [vmem:[#allocation10 + $0x300] sm:$0xff]
    %v1623 = vld [vmem:[#allocation10 + $0x308] sm:$0xff]
    %v1624 = vld [vmem:[#allocation10 + $0x310] sm:$0xff]
    %v1625 = vld [vmem:[#allocation10 + $0x318] sm:$0xff]
    %v1626 = vld [vmem:[#allocation10 + $0x320] sm:$0xff]
    %v1627 = vld [vmem:[#allocation10 + $0x328] sm:$0xff]
    %v1628 = vld [vmem:[#allocation10 + $0x330] sm:$0xff]
    %v1629 = vld [vmem:[#allocation10 + $0x338] sm:$0xff]
    %v1630 = vld [vmem:[#allocation10 + $0x340] sm:$0xff]
    %v1631 = vld [vmem:[#allocation10 + $0x348] sm:$0xff]
    %v1632 = vld [vmem:[#allocation10 + $0x350] sm:$0xff]
    %v1633 = vld [vmem:[#allocation10 + $0x358] sm:$0xff]
    %v1634 = vld [vmem:[#allocation10 + $0x360] sm:$0xff]
    %v1635 = vld [vmem:[#allocation10 + $0x368] sm:$0xff]
    %v1636 = vld [vmem:[#allocation10 + $0x370] sm:$0xff]
    %v1637 = vld [vmem:[#allocation10 + $0x378] sm:$0xff]
    %v1638 = vld [vmem:[#allocation10 + $0x380] sm:$0xff]
    %v1639 = vld [vmem:[#allocation10 + $0x388] sm:$0xff]
    %v1640 = vld [vmem:[#allocation10 + $0x390] sm:$0xff]
    %v1641 = vld [vmem:[#allocation10 + $0x398] sm:$0xff]
    %v1642 = vld [vmem:[#allocation10 + $0x3a0] sm:$0xff]
    %v1643 = vld [vmem:[#allocation10 + $0x3a8] sm:$0xff]
    %v1644 = vld [vmem:[#allocation10 + $0x3b0] sm:$0xff]
    %v1645 = vld [vmem:[#allocation10 + $0x3b8] sm:$0xff]
    %v1646 = vld [vmem:[#allocation10 + $0x3c0] sm:$0xff]
    %v1647 = vld [vmem:[#allocation10 + $0x3c8] sm:$0xff]
    %v1648 = vld [vmem:[#allocation10 + $0x3d0] sm:$0xff]
    %v1649 = vld [vmem:[#allocation10 + $0x3d8] sm:$0xff]
    %v1650 = vld [vmem:[#allocation10 + $0x3e0] sm:$0xff]
    %v1651 = vld [vmem:[#allocation10 + $0x3e8] sm:$0xff]
    %v1652 = vld [vmem:[#allocation10 + $0x3f0] sm:$0xff]
    %v1653 = vld [vmem:[#allocation10 + $0x3f8] sm:$0xff]
    %v1654 = vld [vmem:[%s19] sm:$0x1]
    %v1656 = vperm.slane %v1654, 0
    %1658 = vmatpush.msra.mxu0 %v1541
    %1659 = vmatpush.msra.mxu0 %v1540
    %1660 = vmatpush.msra.mxu0 %v1539
    %1661 = vmatpush.msra.mxu0 %v1538
    %1662 = vmatpush.msra.mxu0 %v1537
    %1663 = vmatpush.msra.mxu0 %v1536
    %1664 = vmatpush.msra.mxu0 %v1535
    %1665 = vmatpush.msra.mxu0 %v1534
    %1666 = vmatpush.msra.mxu0 %v1533
    %1667 = vmatpush.msra.mxu0 %v1532
    %1668 = vmatpush.msra.mxu0 %v1531
    %1669 = vmatpush.msra.mxu0 %v1530
    %1670 = vmatpush.msra.mxu0 %v1529
    %1671 = vmatpush.msra.mxu0 %v1528
    %1672 = vmatpush.msra.mxu0 %v1527
    %1673 = vmatpush.msra.mxu0 %v1526
    %1674 = vmatmul.f32.gmra.mxu0 %v1502
    %v1675 = vpop.f32.mrf.mxu0
    %v1676 = vadd.f32 %v1656, %v1675
    %1677 = vdwg.mxu0
    %1678 = vmatpush.msra.mxu0 %v1557
    %1679 = vmatpush.msra.mxu0 %v1556
    %1680 = vmatpush.msra.mxu0 %v1555
    %1681 = vmatpush.msra.mxu0 %v1554
    %1682 = vmatpush.msra.mxu0 %v1553
    %1683 = vmatpush.msra.mxu0 %v1552
    %1684 = vmatpush.msra.mxu0 %v1551
    %1685 = vmatpush.msra.mxu0 %v1550
    %1686 = vmatpush.msra.mxu0 %v1549
    %1687 = vmatpush.msra.mxu0 %v1548
    %1688 = vmatpush.msra.mxu0 %v1547
    %1689 = vmatpush.msra.mxu0 %v1546
    %1690 = vmatpush.msra.mxu0 %v1545
    %1691 = vmatpush.msra.mxu0 %v1544
    %1692 = vmatpush.msra.mxu0 %v1543
    %1693 = vmatpush.msra.mxu0 %v1542
    %1694 = vmatmul.f32.gmra.mxu0 %v1503
    %v1695 = vpop.f32.mrf.mxu0
    %v1696 = vadd.f32 %v1676, %v1695
    %1697 = vdwg.mxu0
    %1698 = vmatpush.msra.mxu0 %v1573
    %1699 = vmatpush.msra.mxu0 %v1572
    %1700 = vmatpush.msra.mxu0 %v1571
    %1701 = vmatpush.msra.mxu0 %v1570
    %1702 = vmatpush.msra.mxu0 %v1569
    %1703 = vmatpush.msra.mxu0 %v1568
    %1704 = vmatpush.msra.mxu0 %v1567
    %1705 = vmatpush.msra.mxu0 %v1566
    %1706 = vmatpush.msra.mxu0 %v1565
    %1707 = vmatpush.msra.mxu0 %v1564
    %1708 = vmatpush.msra.mxu0 %v1563
    %1709 = vmatpush.msra.mxu0 %v1562
    %1710 = vmatpush.msra.mxu0 %v1561
    %1711 = vmatpush.msra.mxu0 %v1560
    %1712 = vmatpush.msra.mxu0 %v1559
    %1713 = vmatpush.msra.mxu0 %v1558
    %1714 = vmatmul.f32.gmra.mxu0 %v1508
    %v1715 = vpop.f32.mrf.mxu0
    %v1716 = vadd.f32 %v1696, %v1715
    %1717 = vdwg.mxu0
    %1718 = vmatpush.msra.mxu0 %v1589
    %1719 = vmatpush.msra.mxu0 %v1588
    %1720 = vmatpush.msra.mxu0 %v1587
    %1721 = vmatpush.msra.mxu0 %v1586
    %1722 = vmatpush.msra.mxu0 %v1585
    %1723 = vmatpush.msra.mxu0 %v1584
    %1724 = vmatpush.msra.mxu0 %v1583
    %1725 = vmatpush.msra.mxu0 %v1582
    %1726 = vmatpush.msra.mxu0 %v1581
    %1727 = vmatpush.msra.mxu0 %v1580
    %1728 = vmatpush.msra.mxu0 %v1579
    %1729 = vmatpush.msra.mxu0 %v1578
    %1730 = vmatpush.msra.mxu0 %v1577
    %1731 = vmatpush.msra.mxu0 %v1576
    %1732 = vmatpush.msra.mxu0 %v1575
    %1733 = vmatpush.msra.mxu0 %v1574
    %1734 = vmatmul.f32.gmra.mxu0 %v1509
    %v1735 = vpop.f32.mrf.mxu0
    %v1736 = vadd.f32 %v1716, %v1735
    %1737 = vdwg.mxu0
    %1738 = vmatpush.msra.mxu0 %v1605
    %1739 = vmatpush.msra.mxu0 %v1604
    %1740 = vmatpush.msra.mxu0 %v1603
    %1741 = vmatpush.msra.mxu0 %v1602
    %1742 = vmatpush.msra.mxu0 %v1601
    %1743 = vmatpush.msra.mxu0 %v1600
    %1744 = vmatpush.msra.mxu0 %v1599
    %1745 = vmatpush.msra.mxu0 %v1598
    %1746 = vmatpush.msra.mxu0 %v1597
    %1747 = vmatpush.msra.mxu0 %v1596
    %1748 = vmatpush.msra.mxu0 %v1595
    %1749 = vmatpush.msra.mxu0 %v1594
    %1750 = vmatpush.msra.mxu0 %v1593
    %1751 = vmatpush.msra.mxu0 %v1592
    %1752 = vmatpush.msra.mxu0 %v1591
    %1753 = vmatpush.msra.mxu0 %v1590
    %1754 = vmatmul.f32.gmra.mxu0 %v1514
    %v1755 = vpop.f32.mrf.mxu0
    %v1756 = vadd.f32 %v1736, %v1755
    %1757 = vdwg.mxu0
    %1758 = vmatpush.msra.mxu0 %v1621
    %1759 = vmatpush.msra.mxu0 %v1620
    %1760 = vmatpush.msra.mxu0 %v1619
    %1761 = vmatpush.msra.mxu0 %v1618
    %1762 = vmatpush.msra.mxu0 %v1617
    %1763 = vmatpush.msra.mxu0 %v1616
    %1764 = vmatpush.msra.mxu0 %v1615
    %1765 = vmatpush.msra.mxu0 %v1614
    %1766 = vmatpush.msra.mxu0 %v1613
    %1767 = vmatpush.msra.mxu0 %v1612
    %1768 = vmatpush.msra.mxu0 %v1611
    %1769 = vmatpush.msra.mxu0 %v1610
    %1770 = vmatpush.msra.mxu0 %v1609
    %1771 = vmatpush.msra.mxu0 %v1608
    %1772 = vmatpush.msra.mxu0 %v1607
    %1773 = vmatpush.msra.mxu0 %v1606
    %1774 = vmatmul.f32.gmra.mxu0 %v1515
    %v1775 = vpop.f32.mrf.mxu0
    %v1776 = vadd.f32 %v1756, %v1775
    %1777 = vdwg.mxu0
    %1778 = vmatpush.msra.mxu0 %v1637
    %1779 = vmatpush.msra.mxu0 %v1636
    %1780 = vmatpush.msra.mxu0 %v1635
    %1781 = vmatpush.msra.mxu0 %v1634
    %1782 = vmatpush.msra.mxu0 %v1633
    %1783 = vmatpush.msra.mxu0 %v1632
    %1784 = vmatpush.msra.mxu0 %v1631
    %1785 = vmatpush.msra.mxu0 %v1630
    %1786 = vmatpush.msra.mxu0 %v1629
    %1787 = vmatpush.msra.mxu0 %v1628
    %1788 = vmatpush.msra.mxu0 %v1627
    %1789 = vmatpush.msra.mxu0 %v1626
    %1790 = vmatpush.msra.mxu0 %v1625
    %1791 = vmatpush.msra.mxu0 %v1624
    %1792 = vmatpush.msra.mxu0 %v1623
    %1793 = vmatpush.msra.mxu0 %v1622
    %1794 = vmatmul.f32.gmra.mxu0 %v1524
    %v1795 = vpop.f32.mrf.mxu0
    %v1796 = vadd.f32 %v1776, %v1795
    %1797 = vdwg.mxu0
    %1798 = vmatpush.msra.mxu0 %v1653
    %1799 = vmatpush.msra.mxu0 %v1652
    %1800 = vmatpush.msra.mxu0 %v1651
    %1801 = vmatpush.msra.mxu0 %v1650
    %1802 = vmatpush.msra.mxu0 %v1649
    %1803 = vmatpush.msra.mxu0 %v1648
    %1804 = vmatpush.msra.mxu0 %v1647
    %1805 = vmatpush.msra.mxu0 %v1646
    %1806 = vmatpush.msra.mxu0 %v1645
    %1807 = vmatpush.msra.mxu0 %v1644
    %1808 = vmatpush.msra.mxu0 %v1643
    %1809 = vmatpush.msra.mxu0 %v1642
    %1810 = vmatpush.msra.mxu0 %v1641
    %1811 = vmatpush.msra.mxu0 %v1640
    %1812 = vmatpush.msra.mxu0 %v1639
    %1813 = vmatpush.msra.mxu0 %v1638
    %1814 = vmatmul.f32.gmra.mxu0 %v1525
    %v1815 = vpop.f32.mrf.mxu0
    %v1816 = vadd.f32 %v1796, %v1815
    %1817 = vdwg.mxu0
    %1818 = vst [vmem:[#allocation12] sm:$0xf] %v1816
    // Predicated region
    $region98: #{_lambda_.1} parent=1 // pred_check
      _
    $region99: #{_lambda_.1} parent=1 // pred_check_branch
      %1820 = sbr.rel (0) target = $region101
    $region100: #{_lambda_.1} parent=1 // pred_region
      %1822 = vsyncadd [#allocation6], 0
      %s1824 = sshll.u32 [#allocation12], 4
      %s1825 = int_to_ptr.vmem [resolvable:$true] %s1824
      %s1826 = sshll.u32 %s20, 4
      %s1827 = int_to_ptr.hbm [resolvable:$true] %s1826
      %1829 = dma.vmem_to_hbm [thread:$0]  %s1825, 64, %s1827, [#allocation6]
    $region101: #{_lambda_.1} parent=1 // pred_fallthru
      _
    // Predicated region
    $region102: #{_lambda_.1} parent=1 // pred_check
      _
    $region103: #{_lambda_.1} parent=1 // pred_check_branch
      %1831 = sbr.rel (0) target = $region105
    $region104: #{_lambda_.1} parent=1 // pred_region
      %1833 = dma.done [#allocation6], 64
    $region105: #{_lambda_.1} parent=1 // pred_fallthru
      _
    %1834 = vsyncpa [#allocation5], 1
    %1835 = vsyncpa [#allocation8], 1
    %1836 = vsyncpa [#allocation11], 1
    %1837 = vsyncpa [#allocation6], 1

</llo_original>
